<compile_context>
chip_gen: v7x
topology: tpu7x:2x2x1
jax: 0.10.0
libtpu: 0.0.40
codegen_flags: <defaults>
</compile_context>

<pallas_src>
import functools

import jax
import jax.numpy as jnp
from jax.experimental import pallas as pl
from jax.experimental.pallas import tpu as pltpu

EPS = 1e-5


def _round_up(x, m):
    return ((x + m - 1) // m) * m


# -----------------------------------------------------------------------------
# Kernel 1: two phases over row tiles.
#   phase 0: z1 = h @ W1, accumulate BN1 column sum / sumsq
#   phase 1: recompute z1, apply folded BN1 + ReLU (mask padded rows),
#            z2 = a @ W2, accumulate BN2 sum / sumsq, cache z2 to HBM.
# -----------------------------------------------------------------------------
def _stats_kernel(h_ref, w1_ref, g1_ref, be1_ref, w2_ref,          # inputs
                  z2_ref, sum2_ref, sq2_ref,                       # outputs
                  sum1, sq1, sc1, sh1,                             # scratch
                  *, inv_n, n_valid, block_n, need_mask):
    p = pl.program_id(0)   # phase: 0 = BN1 stats, 1 = BN2 stats + z2 cache
    i = pl.program_id(1)   # row tile

    @pl.when((p == 0) & (i == 0))
    def _init_stats():
        sum1[...] = jnp.zeros_like(sum1)
        sq1[...] = jnp.zeros_like(sq1)
        sum2_ref[...] = jnp.zeros_like(sum2_ref)
        sq2_ref[...] = jnp.zeros_like(sq2_ref)

    # z1 = h @ W1  (bf16 inputs, f32 accumulation).  Biases are omitted on
    # purpose: they are exactly cancelled by the following batch-stat BN.
    z1 = jnp.dot(h_ref[...], w1_ref[...], preferred_element_type=jnp.float32)

    @pl.when(p == 0)
    def _accum_bn1():
        # Padded h rows are zero -> z1 rows are zero -> contribute 0; the
        # 1/n factor uses the true N, so no masking is needed here.
        sum1[...] += jnp.sum(z1, axis=0, keepdims=True)
        sq1[...] += jnp.sum(z1 * z1, axis=0, keepdims=True)

    @pl.when((p == 1) & (i == 0))
    def _finalize_bn1():
        mean = sum1[...] * inv_n
        var = sq1[...] * inv_n - mean * mean          # biased variance
        s = g1_ref[...] * jax.lax.rsqrt(var + EPS)
        sc1[...] = s
        sh1[...] = be1_ref[...] - mean * s

    @pl.when(p == 1)
    def _bn2_stats_and_cache():
        # BN1 folded to scale/shift + ReLU.
        a = jnp.maximum(z1 * sc1[...] + sh1[...], 0.0)
        if need_mask:
            # Zero padded rows so they cannot pollute BN2 stats (phase-1 only;
            # the finalize kernel never needs this mask).
            rows = jax.lax.broadcasted_iota(jnp.int32, a.shape, 0) + i * block_n
            a = jnp.where(rows < n_valid, a, 0.0)
        z2 = jnp.dot(a.astype(jnp.bfloat16), w2_ref[...],
                     preferred_element_type=jnp.float32)
        sum2_ref[...] += jnp.sum(z2, axis=0, keepdims=True)
        sq2_ref[...] += jnp.sum(z2 * z2, axis=0, keepdims=True)
        z2_ref[...] = z2          # cache for the finalize kernel


# -----------------------------------------------------------------------------
# Kernel 2: memory-bound finalize.  out = relu(z2 * scale2 + shift2).
# Per-tile recompute of the (1, d_out) scale/shift is a handful of VPU/EUP ops
# hidden under the tile DMA.
# -----------------------------------------------------------------------------
def _finalize_kernel(z2_ref, sum2_ref, sq2_ref, g2_ref, be2_ref, o_ref,
                     *, inv_n):
    mean = sum2_ref[...] * inv_n
    var = sq2_ref[...] * inv_n - mean * mean          # biased variance
    s = g2_ref[...] * jax.lax.rsqrt(var + EPS)
    shift = be2_ref[...] - mean * s
    o_ref[...] = jnp.maximum(z2_ref[...] * s + shift, 0.0)


def _choose_block_n(n, block_n):
    if n >= 256:
        return min(_round_up(block_n, 256), _round_up(n, 256))
    return _round_up(min(block_n, n), 16)


def apply_node_func(h, params, *, block_n=512):
    """h: [N, D_in] float32.  params: dict from init_params.  Returns [N, D_out] f32."""
    n, d_in = h.shape
    hid = params["w1"].shape[1]
    d_out = params["w2"].shape[1]

    # h's feature dim only padded to the bf16 sublane multiple (it is the
    # dominant streamed operand); lane-dense 128 padding on hidden/output dims.
    d_in_p = _round_up(d_in, 16)
    h_p = _round_up(hid, 128)
    d_out_p = _round_up(d_out, 128)
    block_n = _choose_block_n(n, block_n)
    n_p = _round_up(n, block_n)
    n_tiles = n_p // block_n

    def pad2(a, r, c):
        return jnp.pad(a, ((0, r - a.shape[0]), (0, c - a.shape[1])))

    # bf16 inputs for the MXU; BN params stay f32.  b1/b2 deliberately dropped
    # (mathematically cancelled by the training-mode batch-stat BatchNorms).
    h_pad = pad2(h, n_p, d_in_p).astype(jnp.bfloat16)
    w1 = pad2(params["w1"], d_in_p, h_p).astype(jnp.bfloat16)
    w2 = pad2(params["w2"], h_p, d_out_p).astype(jnp.bfloat16)
    g1 = pad2(params["g1"], 1, h_p)
    be1 = pad2(params["be1"], 1, h_p)
    g2 = pad2(params["g2"], 1, d_out_p)
    be2 = pad2(params["be2"], 1, d_out_p)

    inv_n = 1.0 / n

    # ---------------- Call 1: stats + z2 cache ----------------
    stats_kernel = functools.partial(
        _stats_kernel, inv_n=inv_n, n_valid=n, block_n=block_n,
        need_mask=(n_p != n))

    const = lambda shape: pl.BlockSpec(shape, lambda p, i: (0, 0))
    row_tile = lambda cols: pl.BlockSpec((block_n, cols), lambda p, i: (i, 0))
    # z2 cache is only written in phase 1; park on block 0 during phase 0 so
    # no uninitialized VMEM is ever flushed to HBM (index never changes until
    # real data has been written).
    z2_out_spec = pl.BlockSpec((block_n, d_out_p), lambda p, i: (p * i, 0))

    flops1 = 2 * n_p * (2 * d_in_p * h_p + h_p * d_out_p)
    bytes1 = (2 * n_p * d_in_p * 2                       # h streamed twice (bf16)
              + (d_in_p * h_p + h_p * d_out_p) * 2       # weights (bf16, resident)
              + 2 * h_p * 4                              # gamma1/beta1
              + n_p * d_out_p * 4                        # z2 cache write (f32)
              + 2 * d_out_p * 4)                         # sum2/sumsq2 out

    z2_cache, sum2, sq2 = pl.pallas_call(
        stats_kernel,
        out_shape=(
            jax.ShapeDtypeStruct((n_p, d_out_p), jnp.float32),
            jax.ShapeDtypeStruct((1, d_out_p), jnp.float32),
            jax.ShapeDtypeStruct((1, d_out_p), jnp.float32),
        ),
        grid_spec=pltpu.PrefetchScalarGridSpec(
            num_scalar_prefetch=0,
            grid=(2, n_tiles),
            in_specs=[
                row_tile(d_in_p),          # h
                const((d_in_p, h_p)),      # w1 (bf16)
                const((1, h_p)),           # gamma1
                const((1, h_p)),           # beta1
                const((h_p, d_out_p)),     # w2 (bf16)
            ],
            out_specs=[
                z2_out_spec,               # z2 cache
                const((1, d_out_p)),       # sum2
                const((1, d_out_p)),       # sumsq2
            ],
            scratch_shapes=[
                pltpu.VMEM((1, h_p), jnp.float32),      # sum1
                pltpu.VMEM((1, h_p), jnp.float32),      # sumsq1
                pltpu.VMEM((1, h_p), jnp.float32),      # scale1
                pltpu.VMEM((1, h_p), jnp.float32),      # shift1
            ],
        ),
        compiler_params=pltpu.CompilerParams(
            dimension_semantics=("arbitrary", "arbitrary"),
            vmem_limit_bytes=32 * 1024 * 1024),
        cost_estimate=pl.CostEstimate(
            flops=flops1, transcendentals=0, bytes_accessed=bytes1),
    )(h_pad, w1, g1, be1, w2)

    # ---------------- Call 2: finalize BN2 + ReLU ----------------
    fin_kernel = functools.partial(_finalize_kernel, inv_n=inv_n)
    fin_row = lambda: pl.BlockSpec((block_n, d_out_p), lambda i: (i, 0))
    fin_const = lambda: pl.BlockSpec((1, d_out_p), lambda i: (0, 0))

    flops2 = 2 * n_p * d_out_p
    bytes2 = 2 * n_p * d_out_p * 4 + 4 * d_out_p * 4

    out = pl.pallas_call(
        fin_kernel,
        out_shape=jax.ShapeDtypeStruct((n_p, d_out_p), jnp.float32),
        grid_spec=pltpu.PrefetchScalarGridSpec(
            num_scalar_prefetch=0,
            grid=(n_tiles,),
            in_specs=[
                fin_row(),                 # z2 cache
                fin_const(),               # sum2
                fin_const(),               # sumsq2
                fin_const(),               # gamma2
                fin_const(),               # beta2
            ],
            out_specs=fin_row(),
        ),
        compiler_params=pltpu.CompilerParams(
            dimension_semantics=("parallel",),
            vmem_limit_bytes=32 * 1024 * 1024),
        cost_estimate=pl.CostEstimate(
            flops=flops2, transcendentals=0, bytes_accessed=bytes2),
    )(z2_cache, sum2, sq2, g2, be2)

    return out[:n, :d_out]


def init_params(key, d_in, hidden, d_out):
    k1, k2, k3, k4 = jax.random.split(key, 4)
    lim1 = 1.0 / jnp.sqrt(d_in)
    lim2 = 1.0 / jnp.sqrt(hidden)
    return {
        "w1": jax.random.uniform(k1, (d_in, hidden), jnp.float32, -lim1, lim1),
        "b1": jax.random.uniform(k2, (1, hidden), jnp.float32, -lim1, lim1),
        "g1": jnp.ones((1, hidden), jnp.float32),
        "be1": jnp.zeros((1, hidden), jnp.float32),
        "w2": jax.random.uniform(k3, (hidden, d_out), jnp.float32, -lim2, lim2),
        "b2": jax.random.uniform(k4, (1, d_out), jnp.float32, -lim2, lim2),
        "g2": jnp.ones((1, d_out), jnp.float32),
        "be2": jnp.zeros((1, d_out), jnp.float32),
    }


def _reference_f32(h, p):
    """Exact PyTorch training-mode math in f32 (with biases)."""
    z1 = h @ p["w1"] + p["b1"]
    mu1 = z1.mean(0, keepdims=True)
    v1 = ((z1 - mu1) ** 2).mean(0, keepdims=True)
    a = jnp.maximum((z1 - mu1) / jnp.sqrt(v1 + EPS) * p["g1"] + p["be1"], 0.0)
    z2 = a @ p["w2"] + p["b2"]
    mu2 = z2.mean(0, keepdims=True)
    v2 = ((z2 - mu2) ** 2).mean(0, keepdims=True)
    return jnp.maximum((z2 - mu2) / jnp.sqrt(v2 + EPS) * p["g2"] + p["be2"], 0.0)


def _reference_bf16(h, p):
    """Mirrors the kernel numerics (bf16 matmuls, folded BN, no bias)."""
    bf = lambda x: x.astype(jnp.bfloat16)
    z1 = jnp.dot(bf(h), bf(p["w1"]), preferred_element_type=jnp.float32)
    mu1 = z1.mean(0, keepdims=True)
    v1 = (z1 * z1).mean(0, keepdims=True) - mu1 * mu1
    s1 = p["g1"] * jax.lax.rsqrt(v1 + EPS)
    a = jnp.maximum(z1 * s1 + (p["be1"] - mu1 * s1), 0.0)
    z2 = jnp.dot(bf(a), bf(p["w2"]), preferred_element_type=jnp.float32)
    mu2 = z2.mean(0, keepdims=True)
    v2 = (z2 * z2).mean(0, keepdims=True) - mu2 * mu2
    s2 = p["g2"] * jax.lax.rsqrt(v2 + EPS)
    return jnp.maximum(z2 * s2 + (p["be2"] - mu2 * s2), 0.0)


if __name__ == "__main__":
    key = jax.random.PRNGKey(0)
    k_h1, k_h2, k_p = jax.random.split(key, 3)

    D_in, HID, D_out = 32, 64, 32
    params = init_params(k_p, D_in, HID, D_out)

    # Case 1: ragged N over multiple row tiles (cross-tile BN stats + padded-row mask).
    N1 = 640
    h1 = jax.random.normal(k_h1, (N1, D_in), jnp.float32)
    out1 = jax.block_until_ready(apply_node_func(h1, params, block_n=256))
    assert out1.shape == (N1, D_out)
    assert jnp.allclose(out1, _reference_bf16(h1, params), rtol=5e-3, atol=5e-3), \
        "mismatch vs bf16-matched reference (case 1)"
    assert jnp.allclose(out1, _reference_f32(h1, params), rtol=5e-2, atol=5e-2), \
        "mismatch vs f32 PyTorch-semantics reference (case 1)"

    # Case 2: N an exact multiple of the chosen tile (single tile, no masking).
    N2 = 256
    h2 = jax.random.normal(k_h2, (N2, D_in), jnp.float32)
    out2 = jax.block_until_ready(apply_node_func(h2, params))
    assert out2.shape == (N2, D_out)
    assert jnp.allclose(out2, _reference_bf16(h2, params), rtol=5e-3, atol=5e-3), \
        "mismatch vs bf16-matched reference (case 2)"
    assert jnp.allclose(out2, _reference_f32(h2, params), rtol=5e-2, atol=5e-2), \
        "mismatch vs f32 PyTorch-semantics reference (case 2)"

    print("KERNEL_OK")
</pallas_src>

<mosaic_0001>
module attributes {stable_mosaic.version = 11 : i64} {
  func.func @_stats_kernel(%arg0: i32, %arg1: i32, %arg2: memref<256x32xbf16, #tpu.memory_space<vmem>>, %arg3: memref<32x128xbf16, #tpu.memory_space<vmem>>, %arg4: memref<1x128xf32, #tpu.memory_space<vmem>>, %arg5: memref<1x128xf32, #tpu.memory_space<vmem>>, %arg6: memref<128x128xbf16, #tpu.memory_space<vmem>>, %arg7: memref<256x128xf32, #tpu.memory_space<vmem>>, %arg8: memref<1x128xf32, #tpu.memory_space<vmem>>, %arg9: memref<1x128xf32, #tpu.memory_space<vmem>>, %arg10: memref<1x128xf32, #tpu.memory_space<vmem>>, %arg11: memref<1x128xf32, #tpu.memory_space<vmem>>, %arg12: memref<1x128xf32, #tpu.memory_space<vmem>>, %arg13: memref<1x128xf32, #tpu.memory_space<vmem>>) attributes {dimension_semantics = [#tpu.dimension_semantics<arbitrary>, #tpu.dimension_semantics<arbitrary>], iteration_bounds = array<i64: 2, 3>, scalar_prefetch = 0 : i64, scratch_operands = 4 : i64, tpu.core_type = #tpu.core_type<tc>, window_params = [{transform_indices = @transform_0, window_bounds = array<i64: 256, 32>}, {pipeline_mode = #tpu.pipeline_mode<synchronous>, transform_indices = @transform_1, window_bounds = array<i64: 32, 128>}, {pipeline_mode = #tpu.pipeline_mode<synchronous>, transform_indices = @transform_2, window_bounds = array<i64: 1, 128>}, {pipeline_mode = #tpu.pipeline_mode<synchronous>, transform_indices = @transform_3, window_bounds = array<i64: 1, 128>}, {pipeline_mode = #tpu.pipeline_mode<synchronous>, transform_indices = @transform_4, window_bounds = array<i64: 128, 128>}, {transform_indices = @transform_5, window_bounds = array<i64: 256, 128>}, {pipeline_mode = #tpu.pipeline_mode<synchronous>, transform_indices = @transform_6, window_bounds = array<i64: 1, 128>}, {pipeline_mode = #tpu.pipeline_mode<synchronous>, transform_indices = @transform_7, window_bounds = array<i64: 1, 128>}]} {
    %c0_i32 = arith.constant 0 : i32
    %0 = arith.cmpi eq, %arg0, %c0_i32 : i32
    %c0_i32_0 = arith.constant 0 : i32
    %1 = arith.cmpi eq, %arg1, %c0_i32_0 : i32
    %2 = arith.andi %0, %1 : i1
    %3 = arith.extui %2 : i1 to i32
    %c0_i32_1 = arith.constant 0 : i32
    %4 = arith.cmpi ne, %3, %c0_i32_1 : i32
    scf.if %4 {
      %cst_11 = arith.constant 0.000000e+00 : f32
      %19 = vector.broadcast %cst_11 : f32 to vector<1x128xf32>
      %c0_12 = arith.constant 0 : index
      %c0_13 = arith.constant 0 : index
      %20 = vector.load %arg10[%c0_12, %c0_13] : memref<1x128xf32, #tpu.memory_space<vmem>>, vector<1x128xf32>
      tpu.vector_store %arg10[%c0_12, %c0_13], %19 {strides = array<i32>} : memref<1x128xf32, #tpu.memory_space<vmem>>, vector<1x128xf32>,
      %cst_14 = arith.constant 0.000000e+00 : f32
      %21 = vector.broadcast %cst_14 : f32 to vector<1x128xf32>
      %c0_15 = arith.constant 0 : index
      %c0_16 = arith.constant 0 : index
      %22 = vector.load %arg11[%c0_15, %c0_16] : memref<1x128xf32, #tpu.memory_space<vmem>>, vector<1x128xf32>
      tpu.vector_store %arg11[%c0_15, %c0_16], %21 {strides = array<i32>} : memref<1x128xf32, #tpu.memory_space<vmem>>, vector<1x128xf32>,
      %cst_17 = arith.constant 0.000000e+00 : f32
      %23 = vector.broadcast %cst_17 : f32 to vector<1x128xf32>
      %c0_18 = arith.constant 0 : index
      %c0_19 = arith.constant 0 : index
      %24 = vector.load %arg8[%c0_18, %c0_19] : memref<1x128xf32, #tpu.memory_space<vmem>>, vector<1x128xf32>
      tpu.vector_store %arg8[%c0_18, %c0_19], %23 {strides = array<i32>} : memref<1x128xf32, #tpu.memory_space<vmem>>, vector<1x128xf32>,
      %cst_20 = arith.constant 0.000000e+00 : f32
      %25 = vector.broadcast %cst_20 : f32 to vector<1x128xf32>
      %c0_21 = arith.constant 0 : index
      %c0_22 = arith.constant 0 : index
      %26 = vector.load %arg9[%c0_21, %c0_22] : memref<1x128xf32, #tpu.memory_space<vmem>>, vector<1x128xf32>
      tpu.vector_store %arg9[%c0_21, %c0_22], %25 {strides = array<i32>} : memref<1x128xf32, #tpu.memory_space<vmem>>, vector<1x128xf32>,
    } else {
    }
    %c0 = arith.constant 0 : index
    %c0_2 = arith.constant 0 : index
    %5 = vector.load %arg2[%c0, %c0_2] : memref<256x32xbf16, #tpu.memory_space<vmem>>, vector<256x32xbf16>
    %c0_3 = arith.constant 0 : index
    %c0_4 = arith.constant 0 : index
    %6 = vector.load %arg3[%c0_3, %c0_4] : memref<32x128xbf16, #tpu.memory_space<vmem>>, vector<32x128xbf16>
    %cst = arith.constant dense<0.000000e+00> : vector<256x128xf32>
    %7 = tpu.matmul %5, %6, %cst {dimension_numbers = #tpu.dot_dimension_numbers<[1], [0], [0], [1], [0, 0, 1, 1], [], []>} : vector<256x32xbf16>, vector<32x128xbf16>, vector<256x128xf32> -> vector<256x128xf32>
    %c0_i32_5 = arith.constant 0 : i32
    %8 = arith.cmpi eq, %arg0, %c0_i32_5 : i32
    %9 = arith.extui %8 : i1 to i32
    %c0_i32_6 = arith.constant 0 : i32
    %10 = arith.cmpi ne, %9, %c0_i32_6 : i32
    scf.if %10 {
      %c0_11 = arith.constant 0 : index
      %c0_12 = arith.constant 0 : index
      %19 = vector.load %arg10[%c0_11, %c0_12] : memref<1x128xf32, #tpu.memory_space<vmem>>, vector<1x128xf32>
      %cst_13 = arith.constant dense<0.000000e+00> : vector<128xf32>
      %20 = vector.multi_reduction <add>, %7, %cst_13 [0] : vector<256x128xf32> to vector<128xf32>
      %21 = vector.shape_cast %20 : vector<128xf32> to vector<1x128xf32>
      %22 = arith.addf %19, %21 : vector<1x128xf32>
      %c0_14 = arith.constant 0 : index
      %c0_15 = arith.constant 0 : index
      %23 = vector.load %arg10[%c0_14, %c0_15] : memref<1x128xf32, #tpu.memory_space<vmem>>, vector<1x128xf32>
      tpu.vector_store %arg10[%c0_14, %c0_15], %22 {strides = array<i32>} : memref<1x128xf32, #tpu.memory_space<vmem>>, vector<1x128xf32>,
      %c0_16 = arith.constant 0 : index
      %c0_17 = arith.constant 0 : index
      %24 = vector.load %arg11[%c0_16, %c0_17] : memref<1x128xf32, #tpu.memory_space<vmem>>, vector<1x128xf32>
      %25 = arith.mulf %7, %7 : vector<256x128xf32>
      %cst_18 = arith.constant dense<0.000000e+00> : vector<128xf32>
      %26 = vector.multi_reduction <add>, %25, %cst_18 [0] : vector<256x128xf32> to vector<128xf32>
      %27 = vector.shape_cast %26 : vector<128xf32> to vector<1x128xf32>
      %28 = arith.addf %24, %27 : vector<1x128xf32>
      %c0_19 = arith.constant 0 : index
      %c0_20 = arith.constant 0 : index
      %29 = vector.load %arg11[%c0_19, %c0_20] : memref<1x128xf32, #tpu.memory_space<vmem>>, vector<1x128xf32>
      tpu.vector_store %arg11[%c0_19, %c0_20], %28 {strides = array<i32>} : memref<1x128xf32, #tpu.memory_space<vmem>>, vector<1x128xf32>,
    } else {
    }
    %c1_i32 = arith.constant 1 : i32
    %11 = arith.cmpi eq, %arg0, %c1_i32 : i32
    %c0_i32_7 = arith.constant 0 : i32
    %12 = arith.cmpi eq, %arg1, %c0_i32_7 : i32
    %13 = arith.andi %11, %12 : i1
    %14 = arith.extui %13 : i1 to i32
    %c0_i32_8 = arith.constant 0 : i32
    %15 = arith.cmpi ne, %14, %c0_i32_8 : i32
    scf.if %15 {
      %c0_11 = arith.constant 0 : index
      %c0_12 = arith.constant 0 : index
      %19 = vector.load %arg10[%c0_11, %c0_12] : memref<1x128xf32, #tpu.memory_space<vmem>>, vector<1x128xf32>
      %cst_13 = arith.constant 1.562500e-03 : f32
      %20 = vector.broadcast %cst_13 : f32 to vector<1x128xf32>
      %21 = arith.mulf %19, %20 : vector<1x128xf32>
      %c0_14 = arith.constant 0 : index
      %c0_15 = arith.constant 0 : index
      %22 = vector.load %arg11[%c0_14, %c0_15] : memref<1x128xf32, #tpu.memory_space<vmem>>, vector<1x128xf32>
      %cst_16 = arith.constant 1.562500e-03 : f32
      %23 = vector.broadcast %cst_16 : f32 to vector<1x128xf32>
      %24 = arith.mulf %22, %23 : vector<1x128xf32>
      %25 = arith.mulf %21, %21 : vector<1x128xf32>
      %26 = arith.subf %24, %25 : vector<1x128xf32>
      %c0_17 = arith.constant 0 : index
      %c0_18 = arith.constant 0 : index
      %27 = vector.load %arg4[%c0_17, %c0_18] : memref<1x128xf32, #tpu.memory_space<vmem>>, vector<1x128xf32>
      %cst_19 = arith.constant 9.99999974E-6 : f32
      %28 = vector.broadcast %cst_19 : f32 to vector<1x128xf32>
      %29 = arith.addf %26, %28 : vector<1x128xf32>
      %30 = math.rsqrt %29 : vector<1x128xf32>
      %31 = arith.mulf %27, %30 : vector<1x128xf32>
      %c0_20 = arith.constant 0 : index
      %c0_21 = arith.constant 0 : index
      %32 = vector.load %arg12[%c0_20, %c0_21] : memref<1x128xf32, #tpu.memory_space<vmem>>, vector<1x128xf32>
      tpu.vector_store %arg12[%c0_20, %c0_21], %31 {strides = array<i32>} : memref<1x128xf32, #tpu.memory_space<vmem>>, vector<1x128xf32>,
      %c0_22 = arith.constant 0 : index
      %c0_23 = arith.constant 0 : index
      %33 = vector.load %arg5[%c0_22, %c0_23] : memref<1x128xf32, #tpu.memory_space<vmem>>, vector<1x128xf32>
      %34 = arith.mulf %21, %31 : vector<1x128xf32>
      %35 = arith.subf %33, %34 : vector<1x128xf32>
      %c0_24 = arith.constant 0 : index
      %c0_25 = arith.constant 0 : index
      %36 = vector.load %arg13[%c0_24, %c0_25] : memref<1x128xf32, #tpu.memory_space<vmem>>, vector<1x128xf32>
      tpu.vector_store %arg13[%c0_24, %c0_25], %35 {strides = array<i32>} : memref<1x128xf32, #tpu.memory_space<vmem>>, vector<1x128xf32>,
    } else {
    }
    %c1_i32_9 = arith.constant 1 : i32
    %16 = arith.cmpi eq, %arg0, %c1_i32_9 : i32
    %17 = arith.extui %16 : i1 to i32
    %c0_i32_10 = arith.constant 0 : i32
    %18 = arith.cmpi ne, %17, %c0_i32_10 : i32
    scf.if %18 {
      %c0_11 = arith.constant 0 : index
      %c0_12 = arith.constant 0 : index
      %19 = vector.load %arg12[%c0_11, %c0_12] : memref<1x128xf32, #tpu.memory_space<vmem>>, vector<1x128xf32>
      %20 = vector.broadcast %19 : vector<1x128xf32> to vector<256x128xf32>
      %21 = arith.mulf %7, %20 : vector<256x128xf32>
      %c0_13 = arith.constant 0 : index
      %c0_14 = arith.constant 0 : index
      %22 = vector.load %arg13[%c0_13, %c0_14] : memref<1x128xf32, #tpu.memory_space<vmem>>, vector<1x128xf32>
      %23 = vector.broadcast %22 : vector<1x128xf32> to vector<256x128xf32>
      %24 = arith.addf %21, %23 : vector<256x128xf32>
      %cst_15 = arith.constant 0.000000e+00 : f32
      %25 = vector.broadcast %cst_15 : f32 to vector<256x128xf32>
      %26 = arith.maximumf %24, %25 : vector<256x128xf32>
      %27 = tpu.iota {dimensions = array<i32: 0>} : vector<256x128xi32>
      %c256_i32 = arith.constant 256 : i32
      %28 = arith.muli %arg1, %c256_i32 : i32
      %29 = vector.broadcast %28 : i32 to vector<256x128xi32>
      %30 = arith.addi %27, %29 : vector<256x128xi32>
      %c640_i32 = arith.constant 640 : i32
      %31 = vector.broadcast %c640_i32 : i32 to vector<256x128xi32>
      %32 = arith.cmpi slt, %30, %31 : vector<256x128xi32>
      %cst_16 = arith.constant 0.000000e+00 : f32
      %33 = vector.broadcast %cst_16 : f32 to vector<256x128xf32>
      %34 = arith.select %32, %26, %33 : vector<256x128xi1>, vector<256x128xf32>
      %35 = arith.truncf %34 : vector<256x128xf32> to vector<256x128xbf16>
      %c0_17 = arith.constant 0 : index
      %c0_18 = arith.constant 0 : index
      %36 = vector.load %arg6[%c0_17, %c0_18] : memref<128x128xbf16, #tpu.memory_space<vmem>>, vector<128x128xbf16>
      %cst_19 = arith.constant dense<0.000000e+00> : vector<256x128xf32>
      %37 = tpu.matmul %35, %36, %cst_19 {dimension_numbers = #tpu.dot_dimension_numbers<[1], [0], [0], [1], [0, 0, 1, 1], [], []>} : vector<256x128xbf16>, vector<128x128xbf16>, vector<256x128xf32> -> vector<256x128xf32>
      %c0_20 = arith.constant 0 : index
      %c0_21 = arith.constant 0 : index
      %38 = vector.load %arg8[%c0_20, %c0_21] : memref<1x128xf32, #tpu.memory_space<vmem>>, vector<1x128xf32>
      %cst_22 = arith.constant dense<0.000000e+00> : vector<128xf32>
      %39 = vector.multi_reduction <add>, %37, %cst_22 [0] : vector<256x128xf32> to vector<128xf32>
      %40 = vector.shape_cast %39 : vector<128xf32> to vector<1x128xf32>
      %41 = arith.addf %38, %40 : vector<1x128xf32>
      %c0_23 = arith.constant 0 : index
      %c0_24 = arith.constant 0 : index
      %42 = vector.load %arg8[%c0_23, %c0_24] : memref<1x128xf32, #tpu.memory_space<vmem>>, vector<1x128xf32>
      tpu.vector_store %arg8[%c0_23, %c0_24], %41 {strides = array<i32>} : memref<1x128xf32, #tpu.memory_space<vmem>>, vector<1x128xf32>,
      %c0_25 = arith.constant 0 : index
      %c0_26 = arith.constant 0 : index
      %43 = vector.load %arg9[%c0_25, %c0_26] : memref<1x128xf32, #tpu.memory_space<vmem>>, vector<1x128xf32>
      %44 = arith.mulf %37, %37 : vector<256x128xf32>
      %cst_27 = arith.constant dense<0.000000e+00> : vector<128xf32>
      %45 = vector.multi_reduction <add>, %44, %cst_27 [0] : vector<256x128xf32> to vector<128xf32>
      %46 = vector.shape_cast %45 : vector<128xf32> to vector<1x128xf32>
      %47 = arith.addf %43, %46 : vector<1x128xf32>
      %c0_28 = arith.constant 0 : index
      %c0_29 = arith.constant 0 : index
      %48 = vector.load %arg9[%c0_28, %c0_29] : memref<1x128xf32, #tpu.memory_space<vmem>>, vector<1x128xf32>
      tpu.vector_store %arg9[%c0_28, %c0_29], %47 {strides = array<i32>} : memref<1x128xf32, #tpu.memory_space<vmem>>, vector<1x128xf32>,
      %c0_30 = arith.constant 0 : index
      %c0_31 = arith.constant 0 : index
      %49 = vector.load %arg7[%c0_30, %c0_31] : memref<256x128xf32, #tpu.memory_space<vmem>>, vector<256x128xf32>
      tpu.vector_store %arg7[%c0_30, %c0_31], %37 {strides = array<i32>} : memref<256x128xf32, #tpu.memory_space<vmem>>, vector<256x128xf32>,
    } else {
    }
    return
  }
  func.func @transform_0(%arg0: i32, %arg1: i32) -> (i32, i32) {
    %c0_i32 = arith.constant 0 : i32
    %c0_i32_0 = arith.constant 0 : i32
    return %arg1, %c0_i32 : i32, i32
  }
  func.func @transform_1(%arg0: i32, %arg1: i32) -> (i32, i32) {
    %c0_i32 = arith.constant 0 : i32
    %c0_i32_0 = arith.constant 0 : i32
    %c0_i32_1 = arith.constant 0 : i32
    return %c0_i32, %c0_i32_0 : i32, i32
  }
  func.func @transform_2(%arg0: i32, %arg1: i32) -> (i32, i32) {
    %c0_i32 = arith.constant 0 : i32
    %c0_i32_0 = arith.constant 0 : i32
    %c0_i32_1 = arith.constant 0 : i32
    return %c0_i32, %c0_i32_0 : i32, i32
  }
  func.func @transform_3(%arg0: i32, %arg1: i32) -> (i32, i32) {
    %c0_i32 = arith.constant 0 : i32
    %c0_i32_0 = arith.constant 0 : i32
    %c0_i32_1 = arith.constant 0 : i32
    return %c0_i32, %c0_i32_0 : i32, i32
  }
  func.func @transform_4(%arg0: i32, %arg1: i32) -> (i32, i32) {
    %c0_i32 = arith.constant 0 : i32
    %c0_i32_0 = arith.constant 0 : i32
    %c0_i32_1 = arith.constant 0 : i32
    return %c0_i32, %c0_i32_0 : i32, i32
  }
  func.func @transform_5(%arg0: i32, %arg1: i32) -> (i32, i32) {
    %0 = arith.muli %arg0, %arg1 : i32
    %c0_i32 = arith.constant 0 : i32
    %c0_i32_0 = arith.constant 0 : i32
    return %0, %c0_i32 : i32, i32
  }
  func.func @transform_6(%arg0: i32, %arg1: i32) -> (i32, i32) {
    %c0_i32 = arith.constant 0 : i32
    %c0_i32_0 = arith.constant 0 : i32
    %c0_i32_1 = arith.constant 0 : i32
    return %c0_i32, %c0_i32_0 : i32, i32
  }
  func.func @transform_7(%arg0: i32, %arg1: i32) -> (i32, i32) {
    %c0_i32 = arith.constant 0 : i32
    %c0_i32_0 = arith.constant 0 : i32
    %c0_i32_1 = arith.constant 0 : i32
    return %c0_i32, %c0_i32_0 : i32, i32
  }
}

</mosaic_0001>

<llo_original>
// kernel: tpu_custom_call.1
$region0: #{tpu_custom_call.1}
  #allocation0 [shape = 'u32[]', space=smem, size = 0x4, offset = 0x4, fixed_abs, tag = 'smem constant byte address 0x4 - core index']
  #allocation1 [shape = 'u32[144,128]{1,0:T(1,128)}', space=vmem, size = 0x12000, scoped, tag = 'internal scratch']
  #allocation2 [shape = 'f32[1,128]{1,0:T(1,128)}', space=vmem, size = 0x200, scoped, tag = 'scratch operand']
  #allocation3 [shape = 'f32[1,128]{1,0:T(1,128)}', space=vmem, size = 0x200, scoped, tag = 'scratch operand']
  #allocation4 [shape = 'f32[1,128]{1,0:T(1,128)}', space=vmem, size = 0x200, scoped, tag = 'scratch operand']
  #allocation5 [shape = 'f32[1,128]{1,0:T(1,128)}', space=vmem, size = 0x200, scoped, tag = 'scratch operand']
  %s0 = inlined_call_operand.vmem [shape: bf16[768,32], index: 0, kind: input, shape index: {}]
  %s1 = inlined_call_operand.vmem [shape: bf16[32,128], index: 1, kind: input, shape index: {}]
  %s2 = inlined_call_operand.vmem [shape: f32[1,128], index: 2, kind: input, shape index: {}]
  %s3 = inlined_call_operand.vmem [shape: f32[1,128], index: 3, kind: input, shape index: {}]
  %s4 = inlined_call_operand.vmem [shape: bf16[128,128], index: 4, kind: input, shape index: {}]
  %s5 = inlined_call_operand.hbm [shape: f32[768,128], index: 5, kind: output, shape index: {0}]
  %s6 = inlined_call_operand.hbm [shape: f32[1,128], index: 6, kind: output, shape index: {1}]
  %s7 = inlined_call_operand.hbm [shape: f32[1,128], index: 7, kind: output, shape index: {2}]
  %8 = xla_tuple %s5, %s6, %s7
  %s9 = sld [smem:[#allocation0]]
  $region85: #{tpu_custom_call.1} parent=0
    _
  %s11 = ssub.s32 1, %s9
  %s12 = scalar_select 0, %s11, %s9
  $region1: #{tpu_custom_call.1} parent=0
    #allocation6 [shape = 'u8[262144]{0}', space=vmem, size = 0x40000, scoped, tag = 'output window, operand 0']
    #allocation7 [shape = 's32[2]{0}', space=sflag, size = 0x8, scoped, tag = 'scoped memory for tpu_custom_call.1']
    #allocation8 [shape = 'u8[512]{0}', space=vmem, size = 0x400, scoped, tag = 'output window, operand 1, single buffered']
    #allocation9 [shape = 's32[1]{0}', space=sflag, size = 0x4, scoped, tag = 'scoped memory for tpu_custom_call.1']
    #allocation10 [shape = 'u8[512]{0}', space=vmem, size = 0x400, scoped, tag = 'output window, operand 2, single buffered']
    %13 = vsyncpa [#allocation7], 0
    %s14 = scalar_lea.sflag [#allocation7], 1
    %15 = vsyncpa %s14, 0
    %16 = vsyncpa [#allocation9], 0
    loop: start=0, step=1, limit=8
    $region2: #{tpu_custom_call.1} parent=1 // loop_pre_header
      _
    $region3: #{tpu_custom_call.1} parent=1 // loop_header
      %s18 = sphi 0, %s22
      %p19 = scmp.ge.s32.totalorder %s18, 8
      %s25 = sphi 0, %s37
      %s26 = sphi 0, %s33
      %s27 = sphi 0, %s25
      %s28 = sphi 0, %s26
      %s29 = sphi 0, %s27
      %s30 = sphi 0, %s28
      %s40 = sphi 0, %s42
      %s43 = sphi 0, %s40
      %s44 = sphi 0, %s43
      %s60 = sphi 0, %s44
      %s64 = sphi 0, %s64
      %s66 = sphi 0, %s64
      %s67 = sphi 0, %s66
      %s81 = sphi 0, %s67
      %s85 = sphi 0, %s85
      %s87 = sphi 0, %s85
      %s88 = sphi 0, %s87
      %s102 = sphi 0, %s88
      %s106 = sphi 0, %s106
      %s108 = sphi 0, %s106
      %s109 = sphi 0, %s108
      %s123 = sphi 0, %s109
      %s127 = sphi 0, %s127
      %s129 = sphi 0, %s127
      %s130 = sphi 0, %s129
      %s144 = sphi 0, %s130
      %s152 = sphi 0, %s154
      %s155 = sphi 0, %s152
      %s156 = sphi 0, %s155
      %s172 = sphi 0, %s156
      %s176 = sphi 0, %s176
      %s178 = sphi 0, %s176
      %s179 = sphi 0, %s178
      %s193 = sphi 0, %s179
      %s197 = sphi 0, %s197
      %s199 = sphi 0, %s197
      %s200 = sphi 0, %s199
      %s214 = sphi 0, %s200
    $region4: #{tpu_custom_call.1} parent=1 // loop_header_branch
      %21 = sbr.rel (%p19) target = $region8
    $region5: #{tpu_custom_call.1} parent=1 // loop_body
      %s23 = ssub.s32 %s18, 1
      %s24 = ssub.s32 %s18, 2
      %s31 = sadd.s32 1, %s26
      %p32 = scmp.ge.s32.totalorder %s31, 3
      %s33 = scalar_select %p32, 0, %s31
      %s34 = sadd.s32 1, %s25
      %s35 = scalar_select %p32, %s34, %s25
      %p36 = scmp.ge.s32.totalorder %s35, 2
      %s37 = scalar_select %p36, 0, %s35
      %s38 = ssub.s32 %s26, %s33
      %p39 = scmp.eq.s32.totalorder %s38, 0
      %s41 = sadd.s32 %s40, 1
      %s42 = scalar_select %p39, %s40, %s41
      %p45 = pneg %p39
      %p46 = scmp.eq.s32.totalorder %s18, 5
      %p47 = por %p45, %p46
      %p48 = scmp.ne.s32.totalorder %s40, %s43
      %p49 = scmp.eq.s32.totalorder %s18, 0
      %p50 = por %p48, %p49
      %p51 = scmp.ne.s32.totalorder %s40, %s43
      %p52 = scmp.eq.s32.totalorder %s23, 5
      %p53 = por %p51, %p52
      %p54 = scmp.ne.s32.totalorder %s43, %s44
      %p55 = scmp.eq.s32.totalorder %s23, 0
      %p56 = por %p54, %p55
      %p57 = scmp.ne.s32.totalorder %s43, %s44
      %p58 = scmp.eq.s32.totalorder %s24, 5
      %p59 = por %p57, %p58
      %p61 = scmp.ne.s32.totalorder %s44, %s60
      %p62 = scmp.eq.s32.totalorder %s24, 0
      %p63 = por %p61, %p62
      %s65 = sadd.s32 %s64, 1
      %p68 = scmp.eq.s32.totalorder %s18, 5
      %p69 = scmp.ne.s32.totalorder %s64, %s66
      %p70 = scmp.eq.s32.totalorder %s18, 0
      %p71 = por %p69, %p70
      %p72 = scmp.ne.s32.totalorder %s64, %s66
      %p73 = scmp.eq.s32.totalorder %s23, 5
      %p74 = por %p72, %p73
      %p75 = scmp.ne.s32.totalorder %s66, %s67
      %p76 = scmp.eq.s32.totalorder %s23, 0
      %p77 = por %p75, %p76
      %p78 = scmp.ne.s32.totalorder %s66, %s67
      %p79 = scmp.eq.s32.totalorder %s24, 5
      %p80 = por %p78, %p79
      %p82 = scmp.ne.s32.totalorder %s67, %s81
      %p83 = scmp.eq.s32.totalorder %s24, 0
      %p84 = por %p82, %p83
      %s86 = sadd.s32 %s85, 1
      %p89 = scmp.eq.s32.totalorder %s18, 5
      %p90 = scmp.ne.s32.totalorder %s85, %s87
      %p91 = scmp.eq.s32.totalorder %s18, 0
      %p92 = por %p90, %p91
      %p93 = scmp.ne.s32.totalorder %s85, %s87
      %p94 = scmp.eq.s32.totalorder %s23, 5
      %p95 = por %p93, %p94
      %p96 = scmp.ne.s32.totalorder %s87, %s88
      %p97 = scmp.eq.s32.totalorder %s23, 0
      %p98 = por %p96, %p97
      %p99 = scmp.ne.s32.totalorder %s87, %s88
      %p100 = scmp.eq.s32.totalorder %s24, 5
      %p101 = por %p99, %p100
      %p103 = scmp.ne.s32.totalorder %s88, %s102
      %p104 = scmp.eq.s32.totalorder %s24, 0
      %p105 = por %p103, %p104
      %s107 = sadd.s32 %s106, 1
      %p110 = scmp.eq.s32.totalorder %s18, 5
      %p111 = scmp.ne.s32.totalorder %s106, %s108
      %p112 = scmp.eq.s32.totalorder %s18, 0
      %p113 = por %p111, %p112
      %p114 = scmp.ne.s32.totalorder %s106, %s108
      %p115 = scmp.eq.s32.totalorder %s23, 5
      %p116 = por %p114, %p115
      %p117 = scmp.ne.s32.totalorder %s108, %s109
      %p118 = scmp.eq.s32.totalorder %s23, 0
      %p119 = por %p117, %p118
      %p120 = scmp.ne.s32.totalorder %s108, %s109
      %p121 = scmp.eq.s32.totalorder %s24, 5
      %p122 = por %p120, %p121
      %p124 = scmp.ne.s32.totalorder %s109, %s123
      %p125 = scmp.eq.s32.totalorder %s24, 0
      %p126 = por %p124, %p125
      %s128 = sadd.s32 %s127, 1
      %p131 = scmp.eq.s32.totalorder %s18, 5
      %p132 = scmp.ne.s32.totalorder %s127, %s129
      %p133 = scmp.eq.s32.totalorder %s18, 0
      %p134 = por %p132, %p133
      %p135 = scmp.ne.s32.totalorder %s127, %s129
      %p136 = scmp.eq.s32.totalorder %s23, 5
      %p137 = por %p135, %p136
      %p138 = scmp.ne.s32.totalorder %s129, %s130
      %p139 = scmp.eq.s32.totalorder %s23, 0
      %p140 = por %p138, %p139
      %p141 = scmp.ne.s32.totalorder %s129, %s130
      %p142 = scmp.eq.s32.totalorder %s24, 5
      %p143 = por %p141, %p142
      %p145 = scmp.ne.s32.totalorder %s130, %s144
      %p146 = scmp.eq.s32.totalorder %s24, 0
      %p147 = por %p145, %p146
      %s148 = smul.u32 %s25, %s26
      %s149 = smul.u32 %s37, %s33
      %s150 = ssub.s32 %s148, %s149
      %p151 = scmp.eq.s32.totalorder %s150, 0
      %s153 = sadd.s32 %s152, 1
      %s154 = scalar_select %p151, %s152, %s153
      %p157 = pneg %p151
      %p158 = scmp.eq.s32.totalorder %s18, 5
      %p159 = por %p157, %p158
      %p160 = scmp.ne.s32.totalorder %s152, %s155
      %p161 = scmp.eq.s32.totalorder %s18, 0
      %p162 = por %p160, %p161
      %p163 = scmp.ne.s32.totalorder %s152, %s155
      %p164 = scmp.eq.s32.totalorder %s23, 5
      %p165 = por %p163, %p164
      %p166 = scmp.ne.s32.totalorder %s155, %s156
      %p167 = scmp.eq.s32.totalorder %s23, 0
      %p168 = por %p166, %p167
      %p169 = scmp.ne.s32.totalorder %s155, %s156
      %p170 = scmp.eq.s32.totalorder %s24, 5
      %p171 = por %p169, %p170
      %p173 = scmp.ne.s32.totalorder %s156, %s172
      %p174 = scmp.eq.s32.totalorder %s24, 0
      %p175 = por %p173, %p174
      %s177 = sadd.s32 %s176, 1
      %p180 = scmp.eq.s32.totalorder %s18, 5
      %p181 = scmp.ne.s32.totalorder %s176, %s178
      %p182 = scmp.eq.s32.totalorder %s18, 0
      %p183 = por %p181, %p182
      %p184 = scmp.ne.s32.totalorder %s176, %s178
      %p185 = scmp.eq.s32.totalorder %s23, 5
      %p186 = por %p184, %p185
      %p187 = scmp.ne.s32.totalorder %s178, %s179
      %p188 = scmp.eq.s32.totalorder %s23, 0
      %p189 = por %p187, %p188
      %p190 = scmp.ne.s32.totalorder %s178, %s179
      %p191 = scmp.eq.s32.totalorder %s24, 5
      %p192 = por %p190, %p191
      %p194 = scmp.ne.s32.totalorder %s179, %s193
      %p195 = scmp.eq.s32.totalorder %s24, 0
      %p196 = por %p194, %p195
      %s198 = sadd.s32 %s197, 1
      %p201 = scmp.eq.s32.totalorder %s18, 5
      %p202 = scmp.ne.s32.totalorder %s197, %s199
      %p203 = scmp.eq.s32.totalorder %s18, 0
      %p204 = por %p202, %p203
      %p205 = scmp.ne.s32.totalorder %s197, %s199
      %p206 = scmp.eq.s32.totalorder %s23, 5
      %p207 = por %p205, %p206
      %p208 = scmp.ne.s32.totalorder %s199, %s200
      %p209 = scmp.eq.s32.totalorder %s23, 0
      %p210 = por %p208, %p209
      %p211 = scmp.ne.s32.totalorder %s199, %s200
      %p212 = scmp.eq.s32.totalorder %s24, 5
      %p213 = por %p211, %p212
      %p215 = scmp.ne.s32.totalorder %s200, %s214
      %p216 = scmp.eq.s32.totalorder %s24, 0
      %p217 = por %p215, %p216
      %p218 = scmp.le.s32.totalorder 1, %s18
      %p219 = scmp.lt.s32.totalorder %s18, 7
      %p220 = pnand %p218, %p219
      %p221 = pneg %p220
      // Predicated region
      $region9: #{tpu_custom_call.1} parent=5 // pred_check
        _
      $region10: #{tpu_custom_call.1} parent=5 // pred_check_branch
        %223 = sbr.rel (%p220) target = $region12
      $region11: #{tpu_custom_call.1} parent=5 // pred_region
        %s224 = ssub.s32 %s18, 1
        // Predicated region
        $region13: #{tpu_custom_call.1} parent=11 // pred_check
          %p225 = pneg %p77
        $region14: #{tpu_custom_call.1} parent=11 // pred_check_branch
          %227 = sbr.rel (%p225) target = $region16
        $region15: #{tpu_custom_call.1} parent=11 // pred_region
          _
        $region16: #{tpu_custom_call.1} parent=11 // pred_fallthru
          _
        // Predicated region
        $region17: #{tpu_custom_call.1} parent=11 // pred_check
          %p228 = pneg %p98
        $region18: #{tpu_custom_call.1} parent=11 // pred_check_branch
          %230 = sbr.rel (%p228) target = $region20
        $region19: #{tpu_custom_call.1} parent=11 // pred_region
          _
        $region20: #{tpu_custom_call.1} parent=11 // pred_fallthru
          _
        // Predicated region
        $region21: #{tpu_custom_call.1} parent=11 // pred_check
          %p231 = pneg %p119
        $region22: #{tpu_custom_call.1} parent=11 // pred_check_branch
          %233 = sbr.rel (%p231) target = $region24
        $region23: #{tpu_custom_call.1} parent=11 // pred_region
          _
        $region24: #{tpu_custom_call.1} parent=11 // pred_fallthru
          _
        // Predicated region
        $region25: #{tpu_custom_call.1} parent=11 // pred_check
          %p234 = pneg %p140
        $region26: #{tpu_custom_call.1} parent=11 // pred_check_branch
          %236 = sbr.rel (%p234) target = $region28
        $region27: #{tpu_custom_call.1} parent=11 // pred_region
          _
        $region28: #{tpu_custom_call.1} parent=11 // pred_fallthru
          _
      $region12: #{tpu_custom_call.1} parent=5 // pred_fallthru
        _
      %p237 = scmp.lt.s32.totalorder %s18, 6
      // Predicated region
      $region29: #{tpu_custom_call.1} parent=5 // pred_check
        %p238 = pneg %p237
      $region30: #{tpu_custom_call.1} parent=5 // pred_check_branch
        %240 = sbr.rel (%p238) target = $region32
      $region31: #{tpu_custom_call.1} parent=5 // pred_region
        // Predicated region
        $region33: #{tpu_custom_call.1} parent=31 // pred_check
          %p241 = pneg %p50
        $region34: #{tpu_custom_call.1} parent=31 // pred_check_branch
          %243 = sbr.rel (%p241) target = $region36
        $region35: #{tpu_custom_call.1} parent=31 // pred_region
          %s244 = smul.u32 32, %s26
          %p245 = scmp.lt.s32.totalorder %s244, 95
          %s246 = scalar_select %p245, %s244, 95
          %s247 = smul.addr %s246, 4
          %s248 = scalar_lea.vmem %s0, %s247
          %s249 = smul.u32 32, %s26
        $region36: #{tpu_custom_call.1} parent=31 // pred_fallthru
          _
      $region32: #{tpu_custom_call.1} parent=5 // pred_fallthru
        _
      %p250 = scmp.le.s32.totalorder 1, %s18
      %p251 = scmp.lt.s32.totalorder %s18, 7
      %p252 = pnand %p250, %p251
      %p253 = pneg %p252
      // Predicated region
      $region37: #{tpu_custom_call.1} parent=5 // pred_check
        _
      $region38: #{tpu_custom_call.1} parent=5 // pred_check_branch
        %255 = sbr.rel (%p252) target = $region40
      $region39: #{tpu_custom_call.1} parent=5 // pred_region
        %s256 = ssub.s32 %s18, 1
        %s257 = smul.u32 32, %s28
        %p258 = scmp.lt.s32.totalorder %s257, 95
        %s259 = scalar_select %p258, %s257, 95
        %s260 = smul.addr %s259, 4
        %s261 = scalar_lea.vmem %s0, %s260
        %p262 = pneg %p56
        %p263 = pneg %p53
        %p264 = pneg %p77
        %p265 = pneg %p74
        %p266 = pneg %p98
        %p267 = pneg %p95
        %p268 = pneg %p119
        %p269 = pneg %p116
        %p270 = pneg %p140
        %p271 = pneg %p137
        %p272 = pneg %p168
        %p273 = pneg %p165
        %s274 = sand.u32 %s155, 1
        %s275 = scalar_lea.sflag [#allocation7], %s274
        %s276 = sand.u32 %s155, 1
        %s277 = smul.addr %s276, 256
        %s278 = scalar_lea.vmem [#allocation6], %s277
        %p279 = pneg %p189
        %p280 = pneg %p186
        %p281 = pneg %p210
        %p282 = pneg %p207
        %s283 = smul.u32 32, %s28
        %p284 = scmp.lt.s32.totalorder %s283, 95
        %s285 = scalar_select %p284, %s283, 95
        %s286 = smul.addr %s285, 4
        %s287 = scalar_lea.vmem %s0, %s286
        %s288 = smul.u32 32, %s28
        %s289 = smul.u32 %s27, %s28
        %s290 = smul.u32 32, %s289
        %p292 = scmp.eq.s32.totalorder %s27, 0
        %p293 = scmp.eq.s32.totalorder %s28, 0
        %p294 = pnand %p292, %p293
        %p295 = pneg %p294
        // Predicated region
        $region41: #{tpu_custom_call.1} parent=39 // pred_check
          _
        $region42: #{tpu_custom_call.1} parent=39 // pred_check_branch
          %297 = sbr.rel (%p294) target = $region44
        $region43: #{tpu_custom_call.1} parent=39 // pred_region
          %298 = vst [vmem:[#allocation2] sm:$0x1] 0.0
          %299 = vst [vmem:[#allocation3] sm:$0x1] 0.0
          %300 = vst [vmem:[#allocation8] sm:$0x1] 0.0
          %301 = vst [vmem:[#allocation10] sm:$0x1] 0.0
        $region44: #{tpu_custom_call.1} parent=39 // pred_fallthru
          _
        %v302 = vld [vmem:[%s287] sm:$0xf]
        %v303 = vld [vmem:[%s287 + $0x4] sm:$0xf]
        %v304 = vld [vmem:[%s287 + $0x8] sm:$0xf]
        %v305 = vld [vmem:[%s287 + $0xc] sm:$0xf]
        %v306 = vld [vmem:[%s287 + $0x10] sm:$0xf]
        %v307 = vld [vmem:[%s287 + $0x14] sm:$0xf]
        %v308 = vld [vmem:[%s287 + $0x18] sm:$0xf]
        %v309 = vld [vmem:[%s287 + $0x1c] sm:$0xf]
        %v310 = vld [vmem:[%s287 + $0x20] sm:$0xf]
        %v311 = vld [vmem:[%s287 + $0x24] sm:$0xf]
        %v312 = vld [vmem:[%s287 + $0x28] sm:$0xf]
        %v313 = vld [vmem:[%s287 + $0x2c] sm:$0xf]
        %v314 = vld [vmem:[%s287 + $0x30] sm:$0xf]
        %v315 = vld [vmem:[%s287 + $0x34] sm:$0xf]
        %v316 = vld [vmem:[%s287 + $0x38] sm:$0xf]
        %v317 = vld [vmem:[%s287 + $0x3c] sm:$0xf]
        %v318 = vld [vmem:[%s287 + $0x40] sm:$0xf]
        %v319 = vld [vmem:[%s287 + $0x44] sm:$0xf]
        %v320 = vld [vmem:[%s287 + $0x48] sm:$0xf]
        %v321 = vld [vmem:[%s287 + $0x4c] sm:$0xf]
        %v322 = vld [vmem:[%s287 + $0x50] sm:$0xf]
        %v323 = vld [vmem:[%s287 + $0x54] sm:$0xf]
        %v324 = vld [vmem:[%s287 + $0x58] sm:$0xf]
        %v325 = vld [vmem:[%s287 + $0x5c] sm:$0xf]
        %v326 = vld [vmem:[%s287 + $0x60] sm:$0xf]
        %v327 = vld [vmem:[%s287 + $0x64] sm:$0xf]
        %v328 = vld [vmem:[%s287 + $0x68] sm:$0xf]
        %v329 = vld [vmem:[%s287 + $0x6c] sm:$0xf]
        %v330 = vld [vmem:[%s287 + $0x70] sm:$0xf]
        %v331 = vld [vmem:[%s287 + $0x74] sm:$0xf]
        %v332 = vld [vmem:[%s287 + $0x78] sm:$0xf]
        %v333 = vld [vmem:[%s287 + $0x7c] sm:$0xf]
        %v334 = vld [vmem:[%s1] sm:$0xf]
        %v335 = vld [vmem:[%s1 + $0x4] sm:$0xf]
        %v336 = vld [vmem:[%s1 + $0x8] sm:$0xf]
        %v337 = vld [vmem:[%s1 + $0xc] sm:$0xf]
        %v370 = vunpack.c.l.b16 %v302
        %v371 = vunpack.c.l.b16 %v303
        %v372 = vunpack.c.l.b16 %v304
        %v373 = vunpack.c.l.b16 %v305
        %v374 = vunpack.c.l.b16 %v306
        %v375 = vunpack.c.l.b16 %v307
        %v376 = vunpack.c.l.b16 %v308
        %v377 = vunpack.c.l.b16 %v309
        %v378 = vunpack.c.l.b16 %v310
        %v379 = vunpack.c.l.b16 %v311
        %v380 = vunpack.c.l.b16 %v312
        %v381 = vunpack.c.l.b16 %v313
        %v382 = vunpack.c.l.b16 %v314
        %v383 = vunpack.c.l.b16 %v315
        %v384 = vunpack.c.l.b16 %v316
        %v385 = vunpack.c.l.b16 %v317
        %v386 = vunpack.c.l.b16 %v318
        %v387 = vunpack.c.l.b16 %v319
        %v388 = vunpack.c.l.b16 %v320
        %v389 = vunpack.c.l.b16 %v321
        %v390 = vunpack.c.l.b16 %v322
        %v391 = vunpack.c.l.b16 %v323
        %v392 = vunpack.c.l.b16 %v324
        %v393 = vunpack.c.l.b16 %v325
        %v394 = vunpack.c.l.b16 %v326
        %v395 = vunpack.c.l.b16 %v327
        %v396 = vunpack.c.l.b16 %v328
        %v397 = vunpack.c.l.b16 %v329
        %v398 = vunpack.c.l.b16 %v330
        %v399 = vunpack.c.l.b16 %v331
        %v400 = vunpack.c.l.b16 %v332
        %v401 = vunpack.c.l.b16 %v333
        %v402 = vpack.c.b16 %v371, %v370
        %v403 = vpack.c.b16 %v373, %v372
        %v404 = vpack.c.b16 %v375, %v374
        %v405 = vpack.c.b16 %v377, %v376
        %v406 = vpack.c.b16 %v379, %v378
        %v407 = vpack.c.b16 %v381, %v380
        %v408 = vpack.c.b16 %v383, %v382
        %v409 = vpack.c.b16 %v385, %v384
        %v410 = vpack.c.b16 %v387, %v386
        %v411 = vpack.c.b16 %v389, %v388
        %v412 = vpack.c.b16 %v391, %v390
        %v413 = vpack.c.b16 %v393, %v392
        %v414 = vpack.c.b16 %v395, %v394
        %v415 = vpack.c.b16 %v397, %v396
        %v416 = vpack.c.b16 %v399, %v398
        %v417 = vpack.c.b16 %v401, %v400
        %v422 = vunpack.c.l.b16 %v334
        %v423 = vunpack.c.l.b16 %v335
        %v424 = vunpack.c.l.b16 %v336
        %v425 = vunpack.c.l.b16 %v337
        %v426 = vpack.c.b16 %v423, %v422
        %v427 = vpack.c.b16 %v425, %v424
        %vm430 = vcmask 261120
        %v432 = vsel %vm430, %v402, 0
        %v435 = vsel %vm430, %v403, 0
        %v438 = vsel %vm430, %v404, 0
        %v441 = vsel %vm430, %v405, 0
        %v444 = vsel %vm430, %v406, 0
        %v447 = vsel %vm430, %v407, 0
        %v450 = vsel %vm430, %v408, 0
        %v453 = vsel %vm430, %v409, 0
        %v456 = vsel %vm430, %v410, 0
        %v459 = vsel %vm430, %v411, 0
        %v462 = vsel %vm430, %v412, 0
        %v465 = vsel %vm430, %v413, 0
        %v468 = vsel %vm430, %v414, 0
        %v471 = vsel %vm430, %v415, 0
        %v474 = vsel %vm430, %v416, 0
        %v477 = vsel %vm430, %v417, 0
        %479 = vmatprep.subr.bf16.mxu0 0
        %480 = vmatpush1.bf16.msra.mxu0 %v426
        %481 = vmatprep.subr.bf16.mxu0 0
        %482 = vmatpush1.bf16.msra.mxu0 %v427
        %483 = vmatprep.subr.bf16.mxu0 0
        %484 = vmatpush1.bf16.msra.mxu0 0
        %485 = vmatprep.subr.bf16.mxu0 0
        %486 = vmatpush1.bf16.msra.mxu0 0
        %487 = vmatprep.subr.bf16.mxu0 0
        %488 = vmatpush1.bf16.msra.mxu0 0
        %489 = vmatprep.subr.bf16.mxu0 0
        %490 = vmatpush1.bf16.msra.mxu0 0
        %491 = vmatprep.subr.bf16.mxu0 0
        %492 = vmatpush1.bf16.msra.mxu0 0
        %493 = vmatprep.subr.bf16.mxu0 0
        %494 = vmatpush1.bf16.msra.mxu0 0
        %495 = vmatprep.subr.bf16.mxu0 0
        %496 = vmatpush1.bf16.msra.mxu0 0
        %497 = vmatprep.subr.bf16.mxu0 0
        %498 = vmatpush1.bf16.msra.mxu0 0
        %499 = vmatprep.subr.bf16.mxu0 0
        %500 = vmatpush1.bf16.msra.mxu0 0
        %501 = vmatprep.subr.bf16.mxu0 0
        %502 = vmatpush1.bf16.msra.mxu0 0
        %503 = vmatprep.subr.bf16.mxu0 0
        %504 = vmatpush1.bf16.msra.mxu0 0
        %505 = vmatprep.subr.bf16.mxu0 0
        %506 = vmatpush1.bf16.msra.mxu0 0
        %507 = vmatprep.subr.bf16.mxu0 0
        %508 = vmatpush1.bf16.msra.mxu0 0
        %509 = vmatprep.subr.bf16.mxu0 0
        %510 = vmatpush1.bf16.msra.mxu0 0
        %511 = vmatprep.mubr.bf16.mxu0 0
        %512 = vmatmul.mubr.bf16.gmra.mrb[0].mxu0 %v432
        %v513 = vpop.f32.mrb[0].mxu0
        %v514 = vadd.f32 0.0, %v513
        %v515 = vpop.f32.mrb[0].mxu0
        %v516 = vpop.f32.mrb[0].mxu0
        %v517 = vadd.f32 0.0, %v516
        %v518 = vpop.f32.mrb[0].mxu0
        %519 = vmatprep.mubr.bf16.mxu0 0
        %520 = vmatmul.mubr.bf16.gmra.mrb[0].mxu0 %v435
        %v521 = vpop.f32.mrb[0].mxu0
        %v522 = vadd.f32 0.0, %v521
        %v523 = vpop.f32.mrb[0].mxu0
        %v524 = vpop.f32.mrb[0].mxu0
        %v525 = vadd.f32 0.0, %v524
        %v526 = vpop.f32.mrb[0].mxu0
        %527 = vmatprep.mubr.bf16.mxu0 0
        %528 = vmatmul.mubr.bf16.gmra.mrb[0].mxu0 %v438
        %v529 = vpop.f32.mrb[0].mxu0
        %v530 = vadd.f32 0.0, %v529
        %v531 = vpop.f32.mrb[0].mxu0
        %v532 = vpop.f32.mrb[0].mxu0
        %v533 = vadd.f32 0.0, %v532
        %v534 = vpop.f32.mrb[0].mxu0
        %535 = vmatprep.mubr.bf16.mxu0 0
        %536 = vmatmul.mubr.bf16.gmra.mrb[0].mxu0 %v441
        %v537 = vpop.f32.mrb[0].mxu0
        %v538 = vadd.f32 0.0, %v537
        %v539 = vpop.f32.mrb[0].mxu0
        %v540 = vpop.f32.mrb[0].mxu0
        %v541 = vadd.f32 0.0, %v540
        %v542 = vpop.f32.mrb[0].mxu0
        %543 = vmatprep.mubr.bf16.mxu0 0
        %544 = vmatmul.mubr.bf16.gmra.mrb[0].mxu0 %v444
        %v545 = vpop.f32.mrb[0].mxu0
        %v546 = vadd.f32 0.0, %v545
        %v547 = vpop.f32.mrb[0].mxu0
        %v548 = vpop.f32.mrb[0].mxu0
        %v549 = vadd.f32 0.0, %v548
        %v550 = vpop.f32.mrb[0].mxu0
        %551 = vmatprep.mubr.bf16.mxu0 0
        %552 = vmatmul.mubr.bf16.gmra.mrb[0].mxu0 %v447
        %v553 = vpop.f32.mrb[0].mxu0
        %v554 = vadd.f32 0.0, %v553
        %v555 = vpop.f32.mrb[0].mxu0
        %v556 = vpop.f32.mrb[0].mxu0
        %v557 = vadd.f32 0.0, %v556
        %v558 = vpop.f32.mrb[0].mxu0
        %559 = vmatprep.mubr.bf16.mxu0 0
        %560 = vmatmul.mubr.bf16.gmra.mrb[0].mxu0 %v450
        %v561 = vpop.f32.mrb[0].mxu0
        %v562 = vadd.f32 0.0, %v561
        %v563 = vpop.f32.mrb[0].mxu0
        %v564 = vpop.f32.mrb[0].mxu0
        %v565 = vadd.f32 0.0, %v564
        %v566 = vpop.f32.mrb[0].mxu0
        %567 = vmatprep.mubr.bf16.mxu0 0
        %568 = vmatmul.mubr.bf16.gmra.mrb[0].mxu0 %v453
        %v569 = vpop.f32.mrb[0].mxu0
        %v570 = vadd.f32 0.0, %v569
        %v571 = vpop.f32.mrb[0].mxu0
        %v572 = vpop.f32.mrb[0].mxu0
        %v573 = vadd.f32 0.0, %v572
        %v574 = vpop.f32.mrb[0].mxu0
        %575 = vmatprep.mubr.bf16.mxu0 0
        %576 = vmatmul.mubr.bf16.gmra.mrb[0].mxu0 %v456
        %v577 = vpop.f32.mrb[0].mxu0
        %v578 = vadd.f32 0.0, %v577
        %v579 = vpop.f32.mrb[0].mxu0
        %v580 = vpop.f32.mrb[0].mxu0
        %v581 = vadd.f32 0.0, %v580
        %v582 = vpop.f32.mrb[0].mxu0
        %583 = vmatprep.mubr.bf16.mxu0 0
        %584 = vmatmul.mubr.bf16.gmra.mrb[0].mxu0 %v459
        %v585 = vpop.f32.mrb[0].mxu0
        %v586 = vadd.f32 0.0, %v585
        %v587 = vpop.f32.mrb[0].mxu0
        %v588 = vpop.f32.mrb[0].mxu0
        %v589 = vadd.f32 0.0, %v588
        %v590 = vpop.f32.mrb[0].mxu0
        %591 = vmatprep.mubr.bf16.mxu0 0
        %592 = vmatmul.mubr.bf16.gmra.mrb[0].mxu0 %v462
        %v593 = vpop.f32.mrb[0].mxu0
        %v594 = vadd.f32 0.0, %v593
        %v595 = vpop.f32.mrb[0].mxu0
        %v596 = vpop.f32.mrb[0].mxu0
        %v597 = vadd.f32 0.0, %v596
        %v598 = vpop.f32.mrb[0].mxu0
        %599 = vmatprep.mubr.bf16.mxu0 0
        %600 = vmatmul.mubr.bf16.gmra.mrb[0].mxu0 %v465
        %v601 = vpop.f32.mrb[0].mxu0
        %v602 = vadd.f32 0.0, %v601
        %v603 = vpop.f32.mrb[0].mxu0
        %v604 = vpop.f32.mrb[0].mxu0
        %v605 = vadd.f32 0.0, %v604
        %v606 = vpop.f32.mrb[0].mxu0
        %607 = vmatprep.mubr.bf16.mxu0 0
        %608 = vmatmul.mubr.bf16.gmra.mrb[0].mxu0 %v468
        %v609 = vpop.f32.mrb[0].mxu0
        %v610 = vadd.f32 0.0, %v609
        %v611 = vpop.f32.mrb[0].mxu0
        %v612 = vpop.f32.mrb[0].mxu0
        %v613 = vadd.f32 0.0, %v612
        %v614 = vpop.f32.mrb[0].mxu0
        %615 = vmatprep.mubr.bf16.mxu0 0
        %616 = vmatmul.mubr.bf16.gmra.mrb[0].mxu0 %v471
        %v617 = vpop.f32.mrb[0].mxu0
        %v618 = vadd.f32 0.0, %v617
        %v619 = vpop.f32.mrb[0].mxu0
        %v620 = vpop.f32.mrb[0].mxu0
        %v621 = vadd.f32 0.0, %v620
        %v622 = vpop.f32.mrb[0].mxu0
        %623 = vmatprep.mubr.bf16.mxu0 0
        %624 = vmatmul.mubr.bf16.gmra.mrb[0].mxu0 %v474
        %v625 = vpop.f32.mrb[0].mxu0
        %v626 = vadd.f32 0.0, %v625
        %v627 = vpop.f32.mrb[0].mxu0
        %v628 = vpop.f32.mrb[0].mxu0
        %v629 = vadd.f32 0.0, %v628
        %v630 = vpop.f32.mrb[0].mxu0
        %631 = vmatprep.mubr.bf16.mxu0 0
        %632 = vmatmul.mubr.bf16.gmra.mrb[0].mxu0 %v477
        %v633 = vpop.f32.mrb[0].mxu0
        %v634 = vadd.f32 0.0, %v633
        %v635 = vpop.f32.mrb[0].mxu0
        %v636 = vpop.f32.mrb[0].mxu0
        %v637 = vadd.f32 0.0, %v636
        %v638 = vpop.f32.mrb[0].mxu0
        %639 = vdwg.mxu0
        // Predicated region
        $region45: #{tpu_custom_call.1} parent=39 // pred_check
          %p640 = pneg %p292
        $region46: #{tpu_custom_call.1} parent=39 // pred_check_branch
          %642 = sbr.rel (%p640) target = $region48
        $region47: #{tpu_custom_call.1} parent=39 // pred_region
          %v643 = vld [vmem:[#allocation2] sm:$0x1]
          %v644 = vadd.f32 %v514, %v517
          %v645 = vadd.f32 %v644, %v522
          %v646 = vadd.f32 %v645, %v525
          %v647 = vadd.f32 %v646, %v530
          %v648 = vadd.f32 %v647, %v533
          %v649 = vadd.f32 %v648, %v538
          %v650 = vadd.f32 %v649, %v541
          %v651 = vadd.f32 %v650, %v546
          %v652 = vadd.f32 %v651, %v549
          %v653 = vadd.f32 %v652, %v554
          %v654 = vadd.f32 %v653, %v557
          %v655 = vadd.f32 %v654, %v562
          %v656 = vadd.f32 %v655, %v565
          %v657 = vadd.f32 %v656, %v570
          %v658 = vadd.f32 %v657, %v573
          %v659 = vadd.f32 %v658, %v578
          %v660 = vadd.f32 %v659, %v581
          %v661 = vadd.f32 %v660, %v586
          %v662 = vadd.f32 %v661, %v589
          %v663 = vadd.f32 %v662, %v594
          %v664 = vadd.f32 %v663, %v597
          %v665 = vadd.f32 %v664, %v602
          %v666 = vadd.f32 %v665, %v605
          %v667 = vadd.f32 %v666, %v610
          %v668 = vadd.f32 %v667, %v613
          %v669 = vadd.f32 %v668, %v618
          %v670 = vadd.f32 %v669, %v621
          %v671 = vadd.f32 %v670, %v626
          %v672 = vadd.f32 %v671, %v629
          %v673 = vadd.f32 %v672, %v634
          %v674 = vadd.f32 %v673, %v637
          %v675 = vrot.slane %v674, 4
          %v676 = vadd.f32 %v674, %v675
          %v677 = vrot.slane %v676, 2
          %v678 = vadd.f32 %v676, %v677
          %v679 = vrot.slane %v678, 1
          %v680 = vadd.f32 %v678, %v679
          %v681 = vadd.f32 %v643, %v680
          %682 = vst [vmem:[#allocation2] sm:$0x1] %v681
          %v683 = vld [vmem:[#allocation3] sm:$0x1]
          %v684 = vmul.f32 %v514, %v514
          %v685 = vmul.f32 %v517, %v517
          %v686 = vmul.f32 %v522, %v522
          %v687 = vmul.f32 %v525, %v525
          %v688 = vmul.f32 %v530, %v530
          %v689 = vmul.f32 %v533, %v533
          %v690 = vmul.f32 %v538, %v538
          %v691 = vmul.f32 %v541, %v541
          %v692 = vmul.f32 %v546, %v546
          %v693 = vmul.f32 %v549, %v549
          %v694 = vmul.f32 %v554, %v554
          %v695 = vmul.f32 %v557, %v557
          %v696 = vmul.f32 %v562, %v562
          %v697 = vmul.f32 %v565, %v565
          %v698 = vmul.f32 %v570, %v570
          %v699 = vmul.f32 %v573, %v573
          %v700 = vmul.f32 %v578, %v578
          %v701 = vmul.f32 %v581, %v581
          %v702 = vmul.f32 %v586, %v586
          %v703 = vmul.f32 %v589, %v589
          %v704 = vmul.f32 %v594, %v594
          %v705 = vmul.f32 %v597, %v597
          %v706 = vmul.f32 %v602, %v602
          %v707 = vmul.f32 %v605, %v605
          %v708 = vmul.f32 %v610, %v610
          %v709 = vmul.f32 %v613, %v613
          %v710 = vmul.f32 %v618, %v618
          %v711 = vmul.f32 %v621, %v621
          %v712 = vmul.f32 %v626, %v626
          %v713 = vmul.f32 %v629, %v629
          %v714 = vmul.f32 %v634, %v634
          %v715 = vmul.f32 %v637, %v637
          %v716 = vadd.f32 %v684, %v685
          %v717 = vadd.f32 %v716, %v686
          %v718 = vadd.f32 %v717, %v687
          %v719 = vadd.f32 %v718, %v688
          %v720 = vadd.f32 %v719, %v689
          %v721 = vadd.f32 %v720, %v690
          %v722 = vadd.f32 %v721, %v691
          %v723 = vadd.f32 %v722, %v692
          %v724 = vadd.f32 %v723, %v693
          %v725 = vadd.f32 %v724, %v694
          %v726 = vadd.f32 %v725, %v695
          %v727 = vadd.f32 %v726, %v696
          %v728 = vadd.f32 %v727, %v697
          %v729 = vadd.f32 %v728, %v698
          %v730 = vadd.f32 %v729, %v699
          %v731 = vadd.f32 %v730, %v700
          %v732 = vadd.f32 %v731, %v701
          %v733 = vadd.f32 %v732, %v702
          %v734 = vadd.f32 %v733, %v703
          %v735 = vadd.f32 %v734, %v704
          %v736 = vadd.f32 %v735, %v705
          %v737 = vadd.f32 %v736, %v706
          %v738 = vadd.f32 %v737, %v707
          %v739 = vadd.f32 %v738, %v708
          %v740 = vadd.f32 %v739, %v709
          %v741 = vadd.f32 %v740, %v710
          %v742 = vadd.f32 %v741, %v711
          %v743 = vadd.f32 %v742, %v712
          %v744 = vadd.f32 %v743, %v713
          %v745 = vadd.f32 %v744, %v714
          %v746 = vadd.f32 %v745, %v715
          %v747 = vrot.slane %v746, 4
          %v748 = vadd.f32 %v746, %v747
          %v749 = vrot.slane %v748, 2
          %v750 = vadd.f32 %v748, %v749
          %v751 = vrot.slane %v750, 1
          %v752 = vadd.f32 %v750, %v751
          %v753 = vadd.f32 %v683, %v752
          %754 = vst [vmem:[#allocation3] sm:$0x1] %v753
        $region48: #{tpu_custom_call.1} parent=39 // pred_fallthru
          _
        %p755 = scmp.eq.s32.totalorder %s27, 1
        %p756 = pnand %p755, %p293
        %p757 = pneg %p756
        // Predicated region
        $region49: #{tpu_custom_call.1} parent=39 // pred_check
          _
        $region50: #{tpu_custom_call.1} parent=39 // pred_check_branch
          %759 = sbr.rel (%p756) target = $region52
        $region51: #{tpu_custom_call.1} parent=39 // pred_region
          %v760 = vld [vmem:[#allocation2] sm:$0x1]
          %v761 = vmul.f32 %v760, 0.0015625
          %v762 = vld [vmem:[#allocation3] sm:$0x1]
          %v763 = vmul.f32 %v762, 0.0015625
          %v764 = vmul.f32 %v761, %v761
          %v765 = vsub.f32 %v763, %v764
          %v766 = vld [vmem:[%s2] sm:$0x1]
          %v767 = vadd.f32 %v765, 1e-05
          %v768 = vrsqrt.pop %v767
          %v769 = vmul.f32 %v766, %v768
          %770 = vst [vmem:[#allocation4] sm:$0x1] %v769
          %v771 = vld [vmem:[%s3] sm:$0x1]
          %v772 = vmul.f32 %v761, %v769
          %v773 = vsub.f32 %v771, %v772
          %774 = vst [vmem:[#allocation5] sm:$0x1] %v773
        $region52: #{tpu_custom_call.1} parent=39 // pred_fallthru
          _
        // Predicated region
        $region53: #{tpu_custom_call.1} parent=39 // pred_check
          %p775 = pneg %p755
        $region54: #{tpu_custom_call.1} parent=39 // pred_check_branch
          %777 = sbr.rel (%p775) target = $region56
        $region55: #{tpu_custom_call.1} parent=39 // pred_region
          %v778 = vld [vmem:[#allocation4] sm:$0x1]
          %v780 = vlaneseq
          %v781 = vshrl.u32 %v780, 7
          %v782 = vsub.s32 0, %v781
          %v783 = vrot.slane %v778, %v782
          %v785 = vmul.f32 %v514, %v783
          %v786 = vmul.f32 %v517, %v783
          %v787 = vmul.f32 %v522, %v783
          %v788 = vmul.f32 %v525, %v783
          %v789 = vmul.f32 %v530, %v783
          %v790 = vmul.f32 %v533, %v783
          %v791 = vmul.f32 %v538, %v783
          %v792 = vmul.f32 %v541, %v783
          %v793 = vmul.f32 %v546, %v783
          %v794 = vmul.f32 %v549, %v783
          %v795 = vmul.f32 %v554, %v783
          %v796 = vmul.f32 %v557, %v783
          %v797 = vmul.f32 %v562, %v783
          %v798 = vmul.f32 %v565, %v783
          %v799 = vmul.f32 %v570, %v783
          %v800 = vmul.f32 %v573, %v783
          %v801 = vmul.f32 %v578, %v783
          %v802 = vmul.f32 %v581, %v783
          %v803 = vmul.f32 %v586, %v783
          %v804 = vmul.f32 %v589, %v783
          %v805 = vmul.f32 %v594, %v783
          %v806 = vmul.f32 %v597, %v783
          %v807 = vmul.f32 %v602, %v783
          %v808 = vmul.f32 %v605, %v783
          %v809 = vmul.f32 %v610, %v783
          %v810 = vmul.f32 %v613, %v783
          %v811 = vmul.f32 %v618, %v783
          %v812 = vmul.f32 %v621, %v783
          %v813 = vmul.f32 %v626, %v783
          %v814 = vmul.f32 %v629, %v783
          %v815 = vmul.f32 %v634, %v783
          %v816 = vmul.f32 %v637, %v783
          %v817 = vld [vmem:[#allocation5] sm:$0x1]
          %v819 = vlaneseq
          %v820 = vshrl.u32 %v819, 7
          %v821 = vsub.s32 0, %v820
          %v822 = vrot.slane %v817, %v821
          %v824 = vadd.f32 %v785, %v822
          %v825 = vadd.f32 %v786, %v822
          %v826 = vadd.f32 %v787, %v822
          %v827 = vadd.f32 %v788, %v822
          %v828 = vadd.f32 %v789, %v822
          %v829 = vadd.f32 %v790, %v822
          %v830 = vadd.f32 %v791, %v822
          %v831 = vadd.f32 %v792, %v822
          %v832 = vadd.f32 %v793, %v822
          %v833 = vadd.f32 %v794, %v822
          %v834 = vadd.f32 %v795, %v822
          %v835 = vadd.f32 %v796, %v822
          %v836 = vadd.f32 %v797, %v822
          %v837 = vadd.f32 %v798, %v822
          %v838 = vadd.f32 %v799, %v822
          %v839 = vadd.f32 %v800, %v822
          %v840 = vadd.f32 %v801, %v822
          %v841 = vadd.f32 %v802, %v822
          %v842 = vadd.f32 %v803, %v822
          %v843 = vadd.f32 %v804, %v822
          %v844 = vadd.f32 %v805, %v822
          %v845 = vadd.f32 %v806, %v822
          %v846 = vadd.f32 %v807, %v822
          %v847 = vadd.f32 %v808, %v822
          %v848 = vadd.f32 %v809, %v822
          %v849 = vadd.f32 %v810, %v822
          %v850 = vadd.f32 %v811, %v822
          %v851 = vadd.f32 %v812, %v822
          %v852 = vadd.f32 %v813, %v822
          %v853 = vadd.f32 %v814, %v822
          %v854 = vadd.f32 %v815, %v822
          %v855 = vadd.f32 %v816, %v822
          %v856 = vmax.f32 %v824, 0.0
          %v857 = vmax.f32 %v825, 0.0
          %v858 = vmax.f32 %v826, 0.0
          %v859 = vmax.f32 %v827, 0.0
          %v860 = vmax.f32 %v828, 0.0
          %v861 = vmax.f32 %v829, 0.0
          %v862 = vmax.f32 %v830, 0.0
          %v863 = vmax.f32 %v831, 0.0
          %v864 = vmax.f32 %v832, 0.0
          %v865 = vmax.f32 %v833, 0.0
          %v866 = vmax.f32 %v834, 0.0
          %v867 = vmax.f32 %v835, 0.0
          %v868 = vmax.f32 %v836, 0.0
          %v869 = vmax.f32 %v837, 0.0
          %v870 = vmax.f32 %v838, 0.0
          %v871 = vmax.f32 %v839, 0.0
          %v872 = vmax.f32 %v840, 0.0
          %v873 = vmax.f32 %v841, 0.0
          %v874 = vmax.f32 %v842, 0.0
          %v875 = vmax.f32 %v843, 0.0
          %v876 = vmax.f32 %v844, 0.0
          %v877 = vmax.f32 %v845, 0.0
          %v878 = vmax.f32 %v846, 0.0
          %v879 = vmax.f32 %v847, 0.0
          %v880 = vmax.f32 %v848, 0.0
          %v881 = vmax.f32 %v849, 0.0
          %v882 = vmax.f32 %v850, 0.0
          %v883 = vmax.f32 %v851, 0.0
          %v884 = vmax.f32 %v852, 0.0
          %v885 = vmax.f32 %v853, 0.0
          %v886 = vmax.f32 %v854, 0.0
          %v887 = vmax.f32 %v855, 0.0
          %v888 = vlaneseq
          %v889 = vshrl.u32 %v888, 7
          %v890 = vadd.s32 %v889, 8
          %v891 = vadd.s32 %v889, 16
          %v892 = vadd.s32 %v889, 24
          %v893 = vadd.s32 %v889, 32
          %v894 = vadd.s32 %v889, 40
          %v895 = vadd.s32 %v889, 48
          %v896 = vadd.s32 %v889, 56
          %v897 = vadd.s32 %v889, 64
          %v898 = vadd.s32 %v889, 72
          %v899 = vadd.s32 %v889, 80
          %v900 = vadd.s32 %v889, 88
          %v901 = vadd.s32 %v889, 96
          %v902 = vadd.s32 %v889, 104
          %v903 = vadd.s32 %v889, 112
          %v904 = vadd.s32 %v889, 120
          %v905 = vadd.s32 %v889, 128
          %v906 = vadd.s32 %v889, 136
          %v907 = vadd.s32 %v889, 144
          %v908 = vadd.s32 %v889, 152
          %v909 = vadd.s32 %v889, 160
          %v910 = vadd.s32 %v889, 168
          %v911 = vadd.s32 %v889, 176
          %v912 = vadd.s32 %v889, 184
          %v913 = vadd.s32 %v889, 192
          %v914 = vadd.s32 %v889, 200
          %v915 = vadd.s32 %v889, 208
          %v916 = vadd.s32 %v889, 216
          %v917 = vadd.s32 %v889, 224
          %v918 = vadd.s32 %v889, 232
          %v919 = vadd.s32 %v889, 240
          %v920 = vadd.s32 %v889, 248
          %s921 = smul.u32 %s28, 256
          %v922 = vstv %s921
          %v923 = vadd.s32 %v889, %v922
          %v924 = vadd.s32 %v890, %v922
          %v925 = vadd.s32 %v891, %v922
          %v926 = vadd.s32 %v892, %v922
          %v927 = vadd.s32 %v893, %v922
          %v928 = vadd.s32 %v894, %v922
          %v929 = vadd.s32 %v895, %v922
          %v930 = vadd.s32 %v896, %v922
          %v931 = vadd.s32 %v897, %v922
          %v932 = vadd.s32 %v898, %v922
          %v933 = vadd.s32 %v899, %v922
          %v934 = vadd.s32 %v900, %v922
          %v935 = vadd.s32 %v901, %v922
          %v936 = vadd.s32 %v902, %v922
          %v937 = vadd.s32 %v903, %v922
          %v938 = vadd.s32 %v904, %v922
          %v939 = vadd.s32 %v905, %v922
          %v940 = vadd.s32 %v906, %v922
          %v941 = vadd.s32 %v907, %v922
          %v942 = vadd.s32 %v908, %v922
          %v943 = vadd.s32 %v909, %v922
          %v944 = vadd.s32 %v910, %v922
          %v945 = vadd.s32 %v911, %v922
          %v946 = vadd.s32 %v912, %v922
          %v947 = vadd.s32 %v913, %v922
          %v948 = vadd.s32 %v914, %v922
          %v949 = vadd.s32 %v915, %v922
          %v950 = vadd.s32 %v916, %v922
          %v951 = vadd.s32 %v917, %v922
          %v952 = vadd.s32 %v918, %v922
          %v953 = vadd.s32 %v919, %v922
          %v954 = vadd.s32 %v920, %v922
          %vm955 = vcmp.lt.s32.totalorder %v923, 640
          %vm956 = vcmp.lt.s32.totalorder %v924, 640
          %vm957 = vcmp.lt.s32.totalorder %v925, 640
          %vm958 = vcmp.lt.s32.totalorder %v926, 640
          %vm959 = vcmp.lt.s32.totalorder %v927, 640
          %vm960 = vcmp.lt.s32.totalorder %v928, 640
          %vm961 = vcmp.lt.s32.totalorder %v929, 640
          %vm962 = vcmp.lt.s32.totalorder %v930, 640
          %vm963 = vcmp.lt.s32.totalorder %v931, 640
          %vm964 = vcmp.lt.s32.totalorder %v932, 640
          %vm965 = vcmp.lt.s32.totalorder %v933, 640
          %vm966 = vcmp.lt.s32.totalorder %v934, 640
          %vm967 = vcmp.lt.s32.totalorder %v935, 640
          %vm968 = vcmp.lt.s32.totalorder %v936, 640
          %vm969 = vcmp.lt.s32.totalorder %v937, 640
          %vm970 = vcmp.lt.s32.totalorder %v938, 640
          %vm971 = vcmp.lt.s32.totalorder %v939, 640
          %vm972 = vcmp.lt.s32.totalorder %v940, 640
          %vm973 = vcmp.lt.s32.totalorder %v941, 640
          %vm974 = vcmp.lt.s32.totalorder %v942, 640
          %vm975 = vcmp.lt.s32.totalorder %v943, 640
          %vm976 = vcmp.lt.s32.totalorder %v944, 640
          %vm977 = vcmp.lt.s32.totalorder %v945, 640
          %vm978 = vcmp.lt.s32.totalorder %v946, 640
          %vm979 = vcmp.lt.s32.totalorder %v947, 640
          %vm980 = vcmp.lt.s32.totalorder %v948, 640
          %vm981 = vcmp.lt.s32.totalorder %v949, 640
          %vm982 = vcmp.lt.s32.totalorder %v950, 640
          %vm983 = vcmp.lt.s32.totalorder %v951, 640
          %vm984 = vcmp.lt.s32.totalorder %v952, 640
          %vm985 = vcmp.lt.s32.totalorder %v953, 640
          %vm986 = vcmp.lt.s32.totalorder %v954, 640
          %v987 = vsel %vm955, %v856, 0.0
          %v988 = vsel %vm956, %v857, 0.0
          %v989 = vsel %vm957, %v858, 0.0
          %v990 = vsel %vm958, %v859, 0.0
          %v991 = vsel %vm959, %v860, 0.0
          %v992 = vsel %vm960, %v861, 0.0
          %v993 = vsel %vm961, %v862, 0.0
          %v994 = vsel %vm962, %v863, 0.0
          %v995 = vsel %vm963, %v864, 0.0
          %v996 = vsel %vm964, %v865, 0.0
          %v997 = vsel %vm965, %v866, 0.0
          %v998 = vsel %vm966, %v867, 0.0
          %v999 = vsel %vm967, %v868, 0.0
          %v1000 = vsel %vm968, %v869, 0.0
          %v1001 = vsel %vm969, %v870, 0.0
          %v1002 = vsel %vm970, %v871, 0.0
          %v1003 = vsel %vm971, %v872, 0.0
          %v1004 = vsel %vm972, %v873, 0.0
          %v1005 = vsel %vm973, %v874, 0.0
          %v1006 = vsel %vm974, %v875, 0.0
          %v1007 = vsel %vm975, %v876, 0.0
          %v1008 = vsel %vm976, %v877, 0.0
          %v1009 = vsel %vm977, %v878, 0.0
          %v1010 = vsel %vm978, %v879, 0.0
          %v1011 = vsel %vm979, %v880, 0.0
          %v1012 = vsel %vm980, %v881, 0.0
          %v1013 = vsel %vm981, %v882, 0.0
          %v1014 = vsel %vm982, %v883, 0.0
          %v1015 = vsel %vm983, %v884, 0.0
          %v1016 = vsel %vm984, %v885, 0.0
          %v1017 = vsel %vm985, %v886, 0.0
          %v1018 = vsel %vm986, %v887, 0.0
          %v1019 = vpack.c.bf16 %v988, %v987
          %v1020 = vpack.c.bf16 %v990, %v989
          %v1021 = vpack.c.bf16 %v992, %v991
          %v1022 = vpack.c.bf16 %v994, %v993
          %v1023 = vpack.c.bf16 %v996, %v995
          %v1024 = vpack.c.bf16 %v998, %v997
          %v1025 = vpack.c.bf16 %v1000, %v999
          %v1026 = vpack.c.bf16 %v1002, %v1001
          %v1027 = vpack.c.bf16 %v1004, %v1003
          %v1028 = vpack.c.bf16 %v1006, %v1005
          %v1029 = vpack.c.bf16 %v1008, %v1007
          %v1030 = vpack.c.bf16 %v1010, %v1009
          %v1031 = vpack.c.bf16 %v1012, %v1011
          %v1032 = vpack.c.bf16 %v1014, %v1013
          %v1033 = vpack.c.bf16 %v1016, %v1015
          %v1034 = vpack.c.bf16 %v1018, %v1017
          %v1035 = vld [vmem:[%s4] sm:$0xf]
          %v1036 = vld [vmem:[%s4 + $0x4] sm:$0xf]
          %v1037 = vld [vmem:[%s4 + $0x8] sm:$0xf]
          %v1038 = vld [vmem:[%s4 + $0xc] sm:$0xf]
          %v1039 = vld [vmem:[%s4 + $0x10] sm:$0xf]
          %v1040 = vld [vmem:[%s4 + $0x14] sm:$0xf]
          %v1041 = vld [vmem:[%s4 + $0x18] sm:$0xf]
          %v1042 = vld [vmem:[%s4 + $0x1c] sm:$0xf]
          %v1043 = vld [vmem:[%s4 + $0x20] sm:$0xf]
          %v1044 = vld [vmem:[%s4 + $0x24] sm:$0xf]
          %v1045 = vld [vmem:[%s4 + $0x28] sm:$0xf]
          %v1046 = vld [vmem:[%s4 + $0x2c] sm:$0xf]
          %v1047 = vld [vmem:[%s4 + $0x30] sm:$0xf]
          %v1048 = vld [vmem:[%s4 + $0x34] sm:$0xf]
          %v1049 = vld [vmem:[%s4 + $0x38] sm:$0xf]
          %v1050 = vld [vmem:[%s4 + $0x3c] sm:$0xf]
          %v1067 = vunpack.c.l.b16 %v1035
          %v1068 = vunpack.c.l.b16 %v1036
          %v1069 = vunpack.c.l.b16 %v1037
          %v1070 = vunpack.c.l.b16 %v1038
          %v1071 = vunpack.c.l.b16 %v1039
          %v1072 = vunpack.c.l.b16 %v1040
          %v1073 = vunpack.c.l.b16 %v1041
          %v1074 = vunpack.c.l.b16 %v1042
          %v1075 = vunpack.c.l.b16 %v1043
          %v1076 = vunpack.c.l.b16 %v1044
          %v1077 = vunpack.c.l.b16 %v1045
          %v1078 = vunpack.c.l.b16 %v1046
          %v1079 = vunpack.c.l.b16 %v1047
          %v1080 = vunpack.c.l.b16 %v1048
          %v1081 = vunpack.c.l.b16 %v1049
          %v1082 = vunpack.c.l.b16 %v1050
          %v1083 = vpack.c.b16 %v1068, %v1067
          %v1084 = vpack.c.b16 %v1070, %v1069
          %v1085 = vpack.c.b16 %v1072, %v1071
          %v1086 = vpack.c.b16 %v1074, %v1073
          %v1087 = vpack.c.b16 %v1076, %v1075
          %v1088 = vpack.c.b16 %v1078, %v1077
          %v1089 = vpack.c.b16 %v1080, %v1079
          %v1090 = vpack.c.b16 %v1082, %v1081
          %1099 = vmatprep.subr.bf16.mxu0 0
          %1100 = vmatpush1.bf16.msra.mxu0 %v1083
          %1101 = vmatprep.subr.bf16.mxu0 0
          %1102 = vmatpush1.bf16.msra.mxu0 %v1084
          %1103 = vmatprep.subr.bf16.mxu0 0
          %1104 = vmatpush1.bf16.msra.mxu0 %v1085
          %1105 = vmatprep.subr.bf16.mxu0 0
          %1106 = vmatpush1.bf16.msra.mxu0 %v1086
          %1107 = vmatprep.subr.bf16.mxu0 0
          %1108 = vmatpush1.bf16.msra.mxu0 %v1087
          %1109 = vmatprep.subr.bf16.mxu0 0
          %1110 = vmatpush1.bf16.msra.mxu0 %v1088
          %1111 = vmatprep.subr.bf16.mxu0 0
          %1112 = vmatpush1.bf16.msra.mxu0 %v1089
          %1113 = vmatprep.subr.bf16.mxu0 0
          %1114 = vmatpush1.bf16.msra.mxu0 %v1090
          %1115 = vmatprep.subr.bf16.mxu0 0
          %1116 = vmatpush1.bf16.msra.mxu0 0
          %1117 = vmatprep.subr.bf16.mxu0 0
          %1118 = vmatpush1.bf16.msra.mxu0 0
          %1119 = vmatprep.subr.bf16.mxu0 0
          %1120 = vmatpush1.bf16.msra.mxu0 0
          %1121 = vmatprep.subr.bf16.mxu0 0
          %1122 = vmatpush1.bf16.msra.mxu0 0
          %1123 = vmatprep.subr.bf16.mxu0 0
          %1124 = vmatpush1.bf16.msra.mxu0 0
          %1125 = vmatprep.subr.bf16.mxu0 0
          %1126 = vmatpush1.bf16.msra.mxu0 0
          %1127 = vmatprep.subr.bf16.mxu0 0
          %1128 = vmatpush1.bf16.msra.mxu0 0
          %1129 = vmatprep.subr.bf16.mxu0 0
          %1130 = vmatpush1.bf16.msra.mxu0 0
          %1131 = vmatprep.mubr.bf16.mxu0 0
          %1132 = vmatmul.mubr.bf16.gmra.mrb[0].mxu0 %v1019
          %v1133 = vpop.f32.mrb[0].mxu0
          %v1134 = vadd.f32 0.0, %v1133
          %v1135 = vpop.f32.mrb[0].mxu0
          %v1136 = vpop.f32.mrb[0].mxu0
          %v1137 = vadd.f32 0.0, %v1136
          %v1138 = vpop.f32.mrb[0].mxu0
          %1139 = vmatprep.mubr.bf16.mxu0 0
          %1140 = vmatmul.mubr.bf16.gmra.mrb[0].mxu0 %v1020
          %v1141 = vpop.f32.mrb[0].mxu0
          %v1142 = vadd.f32 0.0, %v1141
          %v1143 = vpop.f32.mrb[0].mxu0
          %v1144 = vpop.f32.mrb[0].mxu0
          %v1145 = vadd.f32 0.0, %v1144
          %v1146 = vpop.f32.mrb[0].mxu0
          %1147 = vmatprep.mubr.bf16.mxu0 0
          %1148 = vmatmul.mubr.bf16.gmra.mrb[0].mxu0 %v1021
          %v1149 = vpop.f32.mrb[0].mxu0
          %v1150 = vadd.f32 0.0, %v1149
          %v1151 = vpop.f32.mrb[0].mxu0
          %v1152 = vpop.f32.mrb[0].mxu0
          %v1153 = vadd.f32 0.0, %v1152
          %v1154 = vpop.f32.mrb[0].mxu0
          %1155 = vmatprep.mubr.bf16.mxu0 0
          %1156 = vmatmul.mubr.bf16.gmra.mrb[0].mxu0 %v1022
          %v1157 = vpop.f32.mrb[0].mxu0
          %v1158 = vadd.f32 0.0, %v1157
          %v1159 = vpop.f32.mrb[0].mxu0
          %v1160 = vpop.f32.mrb[0].mxu0
          %v1161 = vadd.f32 0.0, %v1160
          %v1162 = vpop.f32.mrb[0].mxu0
          %1163 = vmatprep.mubr.bf16.mxu0 0
          %1164 = vmatmul.mubr.bf16.gmra.mrb[0].mxu0 %v1023
          %v1165 = vpop.f32.mrb[0].mxu0
          %v1166 = vadd.f32 0.0, %v1165
          %v1167 = vpop.f32.mrb[0].mxu0
          %v1168 = vpop.f32.mrb[0].mxu0
          %v1169 = vadd.f32 0.0, %v1168
          %v1170 = vpop.f32.mrb[0].mxu0
          %1171 = vmatprep.mubr.bf16.mxu0 0
          %1172 = vmatmul.mubr.bf16.gmra.mrb[0].mxu0 %v1024
          %v1173 = vpop.f32.mrb[0].mxu0
          %v1174 = vadd.f32 0.0, %v1173
          %v1175 = vpop.f32.mrb[0].mxu0
          %v1176 = vpop.f32.mrb[0].mxu0
          %v1177 = vadd.f32 0.0, %v1176
          %v1178 = vpop.f32.mrb[0].mxu0
          %1179 = vmatprep.mubr.bf16.mxu0 0
          %1180 = vmatmul.mubr.bf16.gmra.mrb[0].mxu0 %v1025
          %v1181 = vpop.f32.mrb[0].mxu0
          %v1182 = vadd.f32 0.0, %v1181
          %v1183 = vpop.f32.mrb[0].mxu0
          %v1184 = vpop.f32.mrb[0].mxu0
          %v1185 = vadd.f32 0.0, %v1184
          %v1186 = vpop.f32.mrb[0].mxu0
          %1187 = vmatprep.mubr.bf16.mxu0 0
          %1188 = vmatmul.mubr.bf16.gmra.mrb[0].mxu0 %v1026
          %v1189 = vpop.f32.mrb[0].mxu0
          %v1190 = vadd.f32 0.0, %v1189
          %v1191 = vpop.f32.mrb[0].mxu0
          %v1192 = vpop.f32.mrb[0].mxu0
          %v1193 = vadd.f32 0.0, %v1192
          %v1194 = vpop.f32.mrb[0].mxu0
          %1195 = vmatprep.mubr.bf16.mxu0 0
          %1196 = vmatmul.mubr.bf16.gmra.mrb[0].mxu0 %v1027
          %v1197 = vpop.f32.mrb[0].mxu0
          %v1198 = vadd.f32 0.0, %v1197
          %v1199 = vpop.f32.mrb[0].mxu0
          %v1200 = vpop.f32.mrb[0].mxu0
          %v1201 = vadd.f32 0.0, %v1200
          %v1202 = vpop.f32.mrb[0].mxu0
          %1203 = vmatprep.mubr.bf16.mxu0 0
          %1204 = vmatmul.mubr.bf16.gmra.mrb[0].mxu0 %v1028
          %v1205 = vpop.f32.mrb[0].mxu0
          %v1206 = vadd.f32 0.0, %v1205
          %v1207 = vpop.f32.mrb[0].mxu0
          %v1208 = vpop.f32.mrb[0].mxu0
          %v1209 = vadd.f32 0.0, %v1208
          %v1210 = vpop.f32.mrb[0].mxu0
          %1211 = vmatprep.mubr.bf16.mxu0 0
          %1212 = vmatmul.mubr.bf16.gmra.mrb[0].mxu0 %v1029
          %v1213 = vpop.f32.mrb[0].mxu0
          %v1214 = vadd.f32 0.0, %v1213
          %v1215 = vpop.f32.mrb[0].mxu0
          %v1216 = vpop.f32.mrb[0].mxu0
          %v1217 = vadd.f32 0.0, %v1216
          %v1218 = vpop.f32.mrb[0].mxu0
          %1219 = vmatprep.mubr.bf16.mxu0 0
          %1220 = vmatmul.mubr.bf16.gmra.mrb[0].mxu0 %v1030
          %v1221 = vpop.f32.mrb[0].mxu0
          %v1222 = vadd.f32 0.0, %v1221
          %v1223 = vpop.f32.mrb[0].mxu0
          %v1224 = vpop.f32.mrb[0].mxu0
          %v1225 = vadd.f32 0.0, %v1224
          %v1226 = vpop.f32.mrb[0].mxu0
          %1227 = vmatprep.mubr.bf16.mxu0 0
          %1228 = vmatmul.mubr.bf16.gmra.mrb[0].mxu0 %v1031
          %v1229 = vpop.f32.mrb[0].mxu0
          %v1230 = vadd.f32 0.0, %v1229
          %v1231 = vpop.f32.mrb[0].mxu0
          %v1232 = vpop.f32.mrb[0].mxu0
          %v1233 = vadd.f32 0.0, %v1232
          %v1234 = vpop.f32.mrb[0].mxu0
          %1235 = vmatprep.mubr.bf16.mxu0 0
          %1236 = vmatmul.mubr.bf16.gmra.mrb[0].mxu0 %v1032
          %v1237 = vpop.f32.mrb[0].mxu0
          %v1238 = vadd.f32 0.0, %v1237
          %v1239 = vpop.f32.mrb[0].mxu0
          %v1240 = vpop.f32.mrb[0].mxu0
          %v1241 = vadd.f32 0.0, %v1240
          %v1242 = vpop.f32.mrb[0].mxu0
          %1243 = vmatprep.mubr.bf16.mxu0 0
          %1244 = vmatmul.mubr.bf16.gmra.mrb[0].mxu0 %v1033
          %v1245 = vpop.f32.mrb[0].mxu0
          %v1246 = vadd.f32 0.0, %v1245
          %v1247 = vpop.f32.mrb[0].mxu0
          %v1248 = vpop.f32.mrb[0].mxu0
          %v1249 = vadd.f32 0.0, %v1248
          %v1250 = vpop.f32.mrb[0].mxu0
          %1251 = vmatprep.mubr.bf16.mxu0 0
          %1252 = vmatmul.mubr.bf16.gmra.mrb[0].mxu0 %v1034
          %v1253 = vpop.f32.mrb[0].mxu0
          %v1254 = vadd.f32 0.0, %v1253
          %v1255 = vpop.f32.mrb[0].mxu0
          %v1256 = vpop.f32.mrb[0].mxu0
          %v1257 = vadd.f32 0.0, %v1256
          %v1258 = vpop.f32.mrb[0].mxu0
          %1259 = vdwg.mxu0
          %v1260 = vld [vmem:[#allocation8] sm:$0x1]
          %v1261 = vadd.f32 %v1134, %v1137
          %v1262 = vadd.f32 %v1261, %v1142
          %v1263 = vadd.f32 %v1262, %v1145
          %v1264 = vadd.f32 %v1263, %v1150
          %v1265 = vadd.f32 %v1264, %v1153
          %v1266 = vadd.f32 %v1265, %v1158
          %v1267 = vadd.f32 %v1266, %v1161
          %v1268 = vadd.f32 %v1267, %v1166
          %v1269 = vadd.f32 %v1268, %v1169
          %v1270 = vadd.f32 %v1269, %v1174
          %v1271 = vadd.f32 %v1270, %v1177
          %v1272 = vadd.f32 %v1271, %v1182
          %v1273 = vadd.f32 %v1272, %v1185
          %v1274 = vadd.f32 %v1273, %v1190
          %v1275 = vadd.f32 %v1274, %v1193
          %v1276 = vadd.f32 %v1275, %v1198
          %v1277 = vadd.f32 %v1276, %v1201
          %v1278 = vadd.f32 %v1277, %v1206
          %v1279 = vadd.f32 %v1278, %v1209
          %v1280 = vadd.f32 %v1279, %v1214
          %v1281 = vadd.f32 %v1280, %v1217
          %v1282 = vadd.f32 %v1281, %v1222
          %v1283 = vadd.f32 %v1282, %v1225
          %v1284 = vadd.f32 %v1283, %v1230
          %v1285 = vadd.f32 %v1284, %v1233
          %v1286 = vadd.f32 %v1285, %v1238
          %v1287 = vadd.f32 %v1286, %v1241
          %v1288 = vadd.f32 %v1287, %v1246
          %v1289 = vadd.f32 %v1288, %v1249
          %v1290 = vadd.f32 %v1289, %v1254
          %v1291 = vadd.f32 %v1290, %v1257
          %v1292 = vrot.slane %v1291, 4
          %v1293 = vadd.f32 %v1291, %v1292
          %v1294 = vrot.slane %v1293, 2
          %v1295 = vadd.f32 %v1293, %v1294
          %v1296 = vrot.slane %v1295, 1
          %v1297 = vadd.f32 %v1295, %v1296
          %v1298 = vadd.f32 %v1260, %v1297
          %1299 = vst [vmem:[#allocation8] sm:$0x1] %v1298
          %v1300 = vld [vmem:[#allocation10] sm:$0x1]
          %v1301 = vmul.f32 %v1134, %v1134
          %v1302 = vmul.f32 %v1137, %v1137
          %v1303 = vmul.f32 %v1142, %v1142
          %v1304 = vmul.f32 %v1145, %v1145
          %v1305 = vmul.f32 %v1150, %v1150
          %v1306 = vmul.f32 %v1153, %v1153
          %v1307 = vmul.f32 %v1158, %v1158
          %v1308 = vmul.f32 %v1161, %v1161
          %v1309 = vmul.f32 %v1166, %v1166
          %v1310 = vmul.f32 %v1169, %v1169
          %v1311 = vmul.f32 %v1174, %v1174
          %v1312 = vmul.f32 %v1177, %v1177
          %v1313 = vmul.f32 %v1182, %v1182
          %v1314 = vmul.f32 %v1185, %v1185
          %v1315 = vmul.f32 %v1190, %v1190
          %v1316 = vmul.f32 %v1193, %v1193
          %v1317 = vmul.f32 %v1198, %v1198
          %v1318 = vmul.f32 %v1201, %v1201
          %v1319 = vmul.f32 %v1206, %v1206
          %v1320 = vmul.f32 %v1209, %v1209
          %v1321 = vmul.f32 %v1214, %v1214
          %v1322 = vmul.f32 %v1217, %v1217
          %v1323 = vmul.f32 %v1222, %v1222
          %v1324 = vmul.f32 %v1225, %v1225
          %v1325 = vmul.f32 %v1230, %v1230
          %v1326 = vmul.f32 %v1233, %v1233
          %v1327 = vmul.f32 %v1238, %v1238
          %v1328 = vmul.f32 %v1241, %v1241
          %v1329 = vmul.f32 %v1246, %v1246
          %v1330 = vmul.f32 %v1249, %v1249
          %v1331 = vmul.f32 %v1254, %v1254
          %v1332 = vmul.f32 %v1257, %v1257
          %v1333 = vadd.f32 %v1301, %v1302
          %v1334 = vadd.f32 %v1333, %v1303
          %v1335 = vadd.f32 %v1334, %v1304
          %v1336 = vadd.f32 %v1335, %v1305
          %v1337 = vadd.f32 %v1336, %v1306
          %v1338 = vadd.f32 %v1337, %v1307
          %v1339 = vadd.f32 %v1338, %v1308
          %v1340 = vadd.f32 %v1339, %v1309
          %v1341 = vadd.f32 %v1340, %v1310
          %v1342 = vadd.f32 %v1341, %v1311
          %v1343 = vadd.f32 %v1342, %v1312
          %v1344 = vadd.f32 %v1343, %v1313
          %v1345 = vadd.f32 %v1344, %v1314
          %v1346 = vadd.f32 %v1345, %v1315
          %v1347 = vadd.f32 %v1346, %v1316
          %v1348 = vadd.f32 %v1347, %v1317
          %v1349 = vadd.f32 %v1348, %v1318
          %v1350 = vadd.f32 %v1349, %v1319
          %v1351 = vadd.f32 %v1350, %v1320
          %v1352 = vadd.f32 %v1351, %v1321
          %v1353 = vadd.f32 %v1352, %v1322
          %v1354 = vadd.f32 %v1353, %v1323
          %v1355 = vadd.f32 %v1354, %v1324
          %v1356 = vadd.f32 %v1355, %v1325
          %v1357 = vadd.f32 %v1356, %v1326
          %v1358 = vadd.f32 %v1357, %v1327
          %v1359 = vadd.f32 %v1358, %v1328
          %v1360 = vadd.f32 %v1359, %v1329
          %v1361 = vadd.f32 %v1360, %v1330
          %v1362 = vadd.f32 %v1361, %v1331
          %v1363 = vadd.f32 %v1362, %v1332
          %v1364 = vrot.slane %v1363, 4
          %v1365 = vadd.f32 %v1363, %v1364
          %v1366 = vrot.slane %v1365, 2
          %v1367 = vadd.f32 %v1365, %v1366
          %v1368 = vrot.slane %v1367, 1
          %v1369 = vadd.f32 %v1367, %v1368
          %v1370 = vadd.f32 %v1300, %v1369
          %1371 = vst [vmem:[#allocation10] sm:$0x1] %v1370
          %1372 = vst [vmem:[%s278] sm:$0xff] %v1134
          %1373 = vst [vmem:[%s278 + $0x8] sm:$0xff] %v1137
          %1374 = vst [vmem:[%s278 + $0x10] sm:$0xff] %v1142
          %1375 = vst [vmem:[%s278 + $0x18] sm:$0xff] %v1145
          %1376 = vst [vmem:[%s278 + $0x20] sm:$0xff] %v1150
          %1377 = vst [vmem:[%s278 + $0x28] sm:$0xff] %v1153
          %1378 = vst [vmem:[%s278 + $0x30] sm:$0xff] %v1158
          %1379 = vst [vmem:[%s278 + $0x38] sm:$0xff] %v1161
          %1380 = vst [vmem:[%s278 + $0x40] sm:$0xff] %v1166
          %1381 = vst [vmem:[%s278 + $0x48] sm:$0xff] %v1169
          %1382 = vst [vmem:[%s278 + $0x50] sm:$0xff] %v1174
          %1383 = vst [vmem:[%s278 + $0x58] sm:$0xff] %v1177
          %1384 = vst [vmem:[%s278 + $0x60] sm:$0xff] %v1182
          %1385 = vst [vmem:[%s278 + $0x68] sm:$0xff] %v1185
          %1386 = vst [vmem:[%s278 + $0x70] sm:$0xff] %v1190
          %1387 = vst [vmem:[%s278 + $0x78] sm:$0xff] %v1193
          %1388 = vst [vmem:[%s278 + $0x80] sm:$0xff] %v1198
          %1389 = vst [vmem:[%s278 + $0x88] sm:$0xff] %v1201
          %1390 = vst [vmem:[%s278 + $0x90] sm:$0xff] %v1206
          %1391 = vst [vmem:[%s278 + $0x98] sm:$0xff] %v1209
          %1392 = vst [vmem:[%s278 + $0xa0] sm:$0xff] %v1214
          %1393 = vst [vmem:[%s278 + $0xa8] sm:$0xff] %v1217
          %1394 = vst [vmem:[%s278 + $0xb0] sm:$0xff] %v1222
          %1395 = vst [vmem:[%s278 + $0xb8] sm:$0xff] %v1225
          %1396 = vst [vmem:[%s278 + $0xc0] sm:$0xff] %v1230
          %1397 = vst [vmem:[%s278 + $0xc8] sm:$0xff] %v1233
          %1398 = vst [vmem:[%s278 + $0xd0] sm:$0xff] %v1238
          %1399 = vst [vmem:[%s278 + $0xd8] sm:$0xff] %v1241
          %1400 = vst [vmem:[%s278 + $0xe0] sm:$0xff] %v1246
          %1401 = vst [vmem:[%s278 + $0xe8] sm:$0xff] %v1249
          %1402 = vst [vmem:[%s278 + $0xf0] sm:$0xff] %v1254
          %1403 = vst [vmem:[%s278 + $0xf8] sm:$0xff] %v1257
        $region56: #{tpu_custom_call.1} parent=39 // pred_fallthru
          _
        %s1404 = sand.u32 %s155, 1
        %s1405 = scalar_lea.sflag [#allocation7], %s1404
        %s1406 = sand.u32 %s155, 1
        %s1407 = smul.addr %s1406, 256
        %s1408 = scalar_lea.vmem [#allocation6], %s1407
        // Predicated region
        $region57: #{tpu_custom_call.1} parent=39 // pred_check
          %p1409 = pneg %p165
        $region58: #{tpu_custom_call.1} parent=39 // pred_check_branch
          %1411 = sbr.rel (%p1409) target = $region60
        $region59: #{tpu_custom_call.1} parent=39 // pred_region
          %s1412 = smul.u32 %s27, %s28
          %s1413 = smul.u32 32, %s1412
          %s1415 = ssub.s32 4096, 4096
          %1416 = vsyncadd %s1405, %s1415
          %s1417 = smul.addr %s1413, 128
          %s1418 = scalar_lea.hbm %s5, %s1417
          %s1419 = sshll.u32 %s1408, 4
          %s1420 = int_to_ptr.vmem [resolvable:$true] %s1419
          %1425 = dma.vmem_to_hbm [thread:$0]  %s1420, 4096, %s1418, %s1405, 128, 128, 8
        $region60: #{tpu_custom_call.1} parent=39 // pred_fallthru
          _
        // Predicated region
        $region61: #{tpu_custom_call.1} parent=39 // pred_check
          %p1426 = pneg %p186
        $region62: #{tpu_custom_call.1} parent=39 // pred_check_branch
          %1428 = sbr.rel (%p1426) target = $region64
        $region63: #{tpu_custom_call.1} parent=39 // pred_region
          %s1430 = ssub.s32 16, 16
          %1431 = vsyncadd [#allocation9], %s1430
          %s1433 = sshll.u32 [#allocation8], 4
          %s1434 = int_to_ptr.vmem [resolvable:$true] %s1433
          %1436 = dma.vmem_to_hbm [thread:$0]  %s1434, 16, %s6, [#allocation9]
        $region64: #{tpu_custom_call.1} parent=39 // pred_fallthru
          _
        // Predicated region
        $region65: #{tpu_custom_call.1} parent=39 // pred_check
          %p1437 = pneg %p207
        $region66: #{tpu_custom_call.1} parent=39 // pred_check_branch
          %1439 = sbr.rel (%p1437) target = $region68
        $region67: #{tpu_custom_call.1} parent=39 // pred_region
          %s1441 = ssub.s32 16, 16
          %1442 = vsyncadd [#allocation9], %s1441
          %s1444 = sshll.u32 [#allocation10], 4
          %s1445 = int_to_ptr.vmem [resolvable:$true] %s1444
          %1447 = dma.vmem_to_hbm [thread:$0]  %s1445, 16, %s7, [#allocation9]
        $region68: #{tpu_custom_call.1} parent=39 // pred_fallthru
          _
        // Predicated region
        $region69: #{tpu_custom_call.1} parent=39 // pred_check
          %p1448 = pneg %p186
        $region70: #{tpu_custom_call.1} parent=39 // pred_check_branch
          %1450 = sbr.rel (%p1448) target = $region72
        $region71: #{tpu_custom_call.1} parent=39 // pred_region
          %1451 = dma.done [#allocation9], 16
        $region72: #{tpu_custom_call.1} parent=39 // pred_fallthru
          _
        // Predicated region
        $region73: #{tpu_custom_call.1} parent=39 // pred_check
          %p1452 = pneg %p207
        $region74: #{tpu_custom_call.1} parent=39 // pred_check_branch
          %1454 = sbr.rel (%p1452) target = $region76
        $region75: #{tpu_custom_call.1} parent=39 // pred_region
          %1455 = dma.done [#allocation9], 16
        $region76: #{tpu_custom_call.1} parent=39 // pred_fallthru
          _
      $region40: #{tpu_custom_call.1} parent=5 // pred_fallthru
        _
      %p1456 = scmp.le.s32.totalorder 2, %s18
      // Predicated region
      $region77: #{tpu_custom_call.1} parent=5 // pred_check
        %p1457 = pneg %p1456
      $region78: #{tpu_custom_call.1} parent=5 // pred_check_branch
        %1459 = sbr.rel (%p1457) target = $region80
      $region79: #{tpu_custom_call.1} parent=5 // pred_region
        %s1460 = ssub.s32 %s18, 2
        // Predicated region
        $region81: #{tpu_custom_call.1} parent=79 // pred_check
          %p1461 = pneg %p171
        $region82: #{tpu_custom_call.1} parent=79 // pred_check_branch
          %1463 = sbr.rel (%p1461) target = $region84
        $region83: #{tpu_custom_call.1} parent=79 // pred_region
          %s1464 = sand.u32 %s156, 1
          %s1465 = scalar_lea.sflag [#allocation7], %s1464
          %s1466 = sand.u32 %s156, 1
          %s1467 = smul.addr %s1466, 256
          %s1468 = scalar_lea.vmem [#allocation6], %s1467
          %1469 = dma.done %s1465, 4096
        $region84: #{tpu_custom_call.1} parent=79 // pred_fallthru
          _
      $region80: #{tpu_custom_call.1} parent=5 // pred_fallthru
        _
    $region6: #{tpu_custom_call.1} parent=1 // loop_footer
      %s22 = sadd.s32 1, %s18
    $region7: #{tpu_custom_call.1} parent=1 // loop_footer_branch
      %17 = sbr.rel target = $region3
    $region8: #{tpu_custom_call.1} parent=1 // loop_exit
      _
    %1470 = vsyncpa [#allocation7], 1
    %s1471 = scalar_lea.sflag [#allocation7], 1
    %1472 = vsyncpa %s1471, 1
    %1473 = vsyncpa [#allocation9], 1

</llo_original>
